<compile_context>
chip_gen: v5e
topology: v5e:2x2
jax: 0.10.0
libtpu: 0.0.40
codegen_flags: <defaults>
</compile_context>

<pallas_src>
import functools

import jax
import jax.numpy as jnp
from jax.experimental import pallas as pl
from jax.experimental.pallas import tpu as pltpu


# ----------------------------- tiling helpers --------------------------------

def _row_tile(n, target=512):
    """Largest row tile (multiple of 8) dividing n, capped at `target`."""
    if n <= target or n % 8 != 0:
        return n
    tm = target - (target % 8)
    while n % tm != 0:
        tm -= 8
    return tm


def _attn_tiles(s, target_q=256, target_kv=512):
    """Q / KV sequence tiles. KV tile must be a multiple of 128 (mask lane dim) or full S."""
    if s % 8 != 0 or s <= target_q:
        tq = s
    else:
        tq = target_q - (target_q % 8)
        while s % tq != 0:
            tq -= 8
    if s % 128 != 0 or s <= target_kv:
        tkv = s
    else:
        tkv = target_kv - (target_kv % 128)
        while s % tkv != 0:
            tkv -= 128
    return tq, tkv


def _vmem_limit(nbytes):
    """Explicit scoped-VMEM limit: 2x estimate + headroom, valid on v5e/v6e/v7x."""
    return int(min(max(2 * nbytes + (4 << 20), 16 << 20), 64 << 20))


# ----------------------------- kernels ---------------------------------------

def ln_qkv_kernel(x_ref, g_ref, b_ref, w_ref, wb_ref,
                  q_ref, k_ref, v_ref, *, eps, num_heads):
    """LayerNorm + fused QKV projection over a row tile; emits per-head-contiguous q/k/v."""
    R, Hh = x_ref.shape
    D = Hh // num_heads

    x = x_ref[...]                                             # (R, Hh) f32
    mu = jnp.mean(x, axis=-1, keepdims=True)
    var = jnp.mean(jnp.square(x - mu), axis=-1, keepdims=True)
    y = (x - mu) * jax.lax.rsqrt(var + eps) * g_ref[...] + b_ref[...]

    qkv = jnp.dot(y.astype(jnp.bfloat16), w_ref[...],
                  preferred_element_type=jnp.float32) + wb_ref[...]   # (R, 3*Hh) f32

    # TE convention: columns are per-head interleaved [q_h | k_h | v_h] blocks of width D.
    qkv = qkv.reshape(R, num_heads, 3 * D)
    q_ref[...] = qkv[:, :, 0 * D:1 * D].reshape(R, Hh).astype(q_ref.dtype)
    k_ref[...] = qkv[:, :, 1 * D:2 * D].reshape(R, Hh).astype(k_ref.dtype)
    v_ref[...] = qkv[:, :, 2 * D:3 * D].reshape(R, Hh).astype(v_ref.dtype)


def flash_attn_kernel(q_ref, k_ref, v_ref, mask_ref, o_ref,
                      m_sc, l_sc, acc_sc, *, num_heads, scale):
    """Flash-style attention: grid = (batch, q-tile, kv-tile); online softmax over KV."""
    ki = pl.program_id(2)

    @pl.when(ki == 0)
    def _init():
        m_sc[...] = jnp.full_like(m_sc, -jnp.inf)
        l_sc[...] = jnp.zeros_like(l_sc)
        acc_sc[...] = jnp.zeros_like(acc_sc)

    tq, Hh = q_ref.shape[1], q_ref.shape[2]
    tkv = k_ref.shape[1]
    D = Hh // num_heads

    q = q_ref[0].reshape(tq, num_heads, D)                     # bf16
    k = k_ref[0].reshape(tkv, num_heads, D)
    v = v_ref[0].reshape(tkv, num_heads, D)

    # scores (H, tq, tkv): contraction over D, batched over heads, no explicit K transpose.
    s = jax.lax.dot_general(
        q, k, dimension_numbers=(((2,), (2,)), ((1,), (1,))),
        preferred_element_type=jnp.float32) * scale

    mask = mask_ref[0, 0]                                      # (tq, tkv) int32, 1 = masked out
    s = jnp.where(mask[None, :, :] != 0, jnp.float32(-1e30), s)

    m_prev = m_sc[...]                                         # (H, tq, 1)
    m_new = jnp.maximum(m_prev, jnp.max(s, axis=-1, keepdims=True))
    alpha = jnp.exp(m_prev - m_new)
    p = jnp.exp(s - m_new)                                     # (H, tq, tkv) f32
    l_sc[...] = alpha * l_sc[...] + jnp.sum(p, axis=-1, keepdims=True)

    pv = jax.lax.dot_general(
        p.astype(v.dtype), v,
        dimension_numbers=(((2,), (0,)), ((0,), (1,))),
        preferred_element_type=jnp.float32)                    # (H, tq, D)
    acc_sc[...] = alpha * acc_sc[...] + pv
    m_sc[...] = m_new

    @pl.when(ki == pl.num_programs(2) - 1)
    def _finalize():
        inv_l = pl.reciprocal(l_sc[...], approx=True)
        ctx = acc_sc[...] * inv_l                              # (H, tq, D) f32
        ctx = jnp.transpose(ctx, (1, 0, 2)).reshape(tq, Hh)    # lane-dense (tq, H*D)
        o_ref[0] = ctx.astype(o_ref.dtype)


def proj_mlp_kernel(ctx_ref, res_ref, wp_ref, bp_ref, g_ref, b_ref,
                    w1_ref, b1_ref, w2_ref, b2_ref, o_ref, *, eps):
    """Fused: out-proj + residual + LayerNorm + FC1 + GELU + FC2 + residual (one row tile)."""
    ctx = ctx_ref[...]                                                         # bf16 (tm, Hh)
    proj = jnp.dot(ctx, wp_ref[...], preferred_element_type=jnp.float32) + bp_ref[...]
    x = proj + res_ref[...]                                                    # f32 residual add

    mu = jnp.mean(x, axis=-1, keepdims=True)
    var = jnp.mean(jnp.square(x - mu), axis=-1, keepdims=True)
    y = (x - mu) * jax.lax.rsqrt(var + eps) * g_ref[...] + b_ref[...]

    h = jnp.dot(y.astype(jnp.bfloat16), w1_ref[...],
                preferred_element_type=jnp.float32) + b1_ref[...]
    h = jax.nn.gelu(h, approximate=True)   # TODO(synk): exact erf GELU in TE
    out = jnp.dot(h.astype(jnp.bfloat16), w2_ref[...],
                  preferred_element_type=jnp.float32) + b2_ref[...]
    o_ref[...] = (out + x).astype(o_ref.dtype)


# ----------------------------- wrapper ----------------------------------------

def transformer_layer(x, attention_mask, params, *, num_heads, eps=1e-5):
    """x: [S, B, hidden] f32, attention_mask: [B, 1, S, S] int32 (1 = mask out)."""
    S, B, Hh = x.shape
    D = Hh // num_heads
    N = B * S
    F = params["w_fc1"].shape[1]
    f32, bf16 = jnp.float32, jnp.bfloat16

    w_qkv = params["w_qkv"].astype(bf16)
    w_proj = params["w_proj"].astype(bf16)
    w_fc1 = params["w_fc1"].astype(bf16)
    w_fc2 = params["w_fc2"].astype(bf16)

    # single layout change: [S, B, Hh] -> batch-major rows [B*S, Hh]
    xb2d = jnp.transpose(x, (1, 0, 2)).reshape(N, Hh).astype(f32)
    mask = jnp.broadcast_to(attention_mask.astype(jnp.int32), (B, 1, S, S))

    tm = _row_tile(N)
    tq, tkv = _attn_tiles(S)
    scale = 1.0 / float(D) ** 0.5

    # --- 1) LayerNorm + QKV projection (row-tiled, weight-resident) ------------
    qkv_vmem = _vmem_limit(
        Hh * 3 * Hh * 2 + (3 * Hh + 2 * Hh) * 4
        + 2 * tm * Hh * 4 + 2 * 3 * tm * Hh * 2
        + tm * 3 * Hh * 4 + tm * Hh * 4)
    q2d, k2d, v2d = pl.pallas_call(
        functools.partial(ln_qkv_kernel, eps=eps, num_heads=num_heads),
        out_shape=(jax.ShapeDtypeStruct((N, Hh), bf16),
                   jax.ShapeDtypeStruct((N, Hh), bf16),
                   jax.ShapeDtypeStruct((N, Hh), bf16)),
        grid=(N // tm,),
        in_specs=[
            pl.BlockSpec((tm, Hh), lambda i: (i, 0)),
            pl.BlockSpec((1, Hh), lambda i: (0, 0)),
            pl.BlockSpec((1, Hh), lambda i: (0, 0)),
            pl.BlockSpec((Hh, 3 * Hh), lambda i: (0, 0)),
            pl.BlockSpec((1, 3 * Hh), lambda i: (0, 0)),
        ],
        out_specs=(pl.BlockSpec((tm, Hh), lambda i: (i, 0)),
                   pl.BlockSpec((tm, Hh), lambda i: (i, 0)),
                   pl.BlockSpec((tm, Hh), lambda i: (i, 0))),
        compiler_params=pltpu.CompilerParams(
            dimension_semantics=("parallel",), vmem_limit_bytes=qkv_vmem),
    )(xb2d, params["ln1_g"], params["ln1_b"], w_qkv, params["b_qkv"])

    qh = q2d.reshape(B, S, Hh)   # free reshapes (no data movement)
    kh = k2d.reshape(B, S, Hh)
    vh = v2d.reshape(B, S, Hh)

    # --- 2) flash-style attention: grid (B, q-tiles, kv-tiles) -----------------
    attn_vmem = _vmem_limit(
        2 * (tq * Hh * 2 + 2 * tkv * Hh * 2 + tq * tkv * 4 + tq * Hh * 2)
        + num_heads * tq * (D + 2) * 4
        + 3 * num_heads * tq * tkv * 4 + num_heads * tq * D * 4)
    ctx = pl.pallas_call(
        functools.partial(flash_attn_kernel, num_heads=num_heads, scale=scale),
        out_shape=jax.ShapeDtypeStruct((B, S, Hh), bf16),
        grid=(B, S // tq, S // tkv),
        in_specs=[
            pl.BlockSpec((1, tq, Hh), lambda b, qi, ki: (b, qi, 0)),
            pl.BlockSpec((1, tkv, Hh), lambda b, qi, ki: (b, ki, 0)),
            pl.BlockSpec((1, tkv, Hh), lambda b, qi, ki: (b, ki, 0)),
            pl.BlockSpec((1, 1, tq, tkv), lambda b, qi, ki: (b, 0, qi, ki)),
        ],
        out_specs=pl.BlockSpec((1, tq, Hh), lambda b, qi, ki: (b, qi, 0)),
        scratch_shapes=[
            pltpu.VMEM((num_heads, tq, 1), f32),
            pltpu.VMEM((num_heads, tq, 1), f32),
            pltpu.VMEM((num_heads, tq, D), f32),
        ],
        compiler_params=pltpu.CompilerParams(
            dimension_semantics=("parallel", "parallel", "arbitrary"),
            vmem_limit_bytes=attn_vmem),
    )(qh, kh, vh, mask)

    ctx2d = ctx.reshape(N, Hh)

    # --- 3) fused proj + residual + LayerNorm + MLP + residual ------------------
    mlp_vmem = _vmem_limit(
        (Hh * Hh + 2 * Hh * F) * 2 + (4 * Hh + F) * 4
        + 2 * tm * Hh * (2 + 4 + 4)
        + 2 * tm * F * 4 + 4 * tm * Hh * 4)
    out2d = pl.pallas_call(
        functools.partial(proj_mlp_kernel, eps=eps),
        out_shape=jax.ShapeDtypeStruct((N, Hh), f32),
        grid=(N // tm,),
        in_specs=[
            pl.BlockSpec((tm, Hh), lambda i: (i, 0)),    # attention context (bf16)
            pl.BlockSpec((tm, Hh), lambda i: (i, 0)),    # residual (f32)
            pl.BlockSpec((Hh, Hh), lambda i: (0, 0)),
            pl.BlockSpec((1, Hh), lambda i: (0, 0)),
            pl.BlockSpec((1, Hh), lambda i: (0, 0)),
            pl.BlockSpec((1, Hh), lambda i: (0, 0)),
            pl.BlockSpec((Hh, F), lambda i: (0, 0)),
            pl.BlockSpec((1, F), lambda i: (0, 0)),
            pl.BlockSpec((F, Hh), lambda i: (0, 0)),
            pl.BlockSpec((1, Hh), lambda i: (0, 0)),
        ],
        out_specs=pl.BlockSpec((tm, Hh), lambda i: (i, 0)),
        compiler_params=pltpu.CompilerParams(
            dimension_semantics=("parallel",), vmem_limit_bytes=mlp_vmem),
    )(ctx2d, xb2d, w_proj, params["b_proj"], params["ln2_g"], params["ln2_b"],
      w_fc1, params["b_fc1"], w_fc2, params["b_fc2"])

    # back to the [S, B, Hh] layout of the module
    return jnp.transpose(out2d.reshape(B, S, Hh), (1, 0, 2))


# ----------------------------- param init -------------------------------------

def init_params(key, hidden, ffn_hidden):
    ks = jax.random.split(key, 4)
    std = 0.02
    f32, bf16 = jnp.float32, jnp.bfloat16
    return {
        "ln1_g": jnp.ones((1, hidden), f32),
        "ln1_b": jnp.zeros((1, hidden), f32),
        "w_qkv": (std * jax.random.normal(ks[0], (hidden, 3 * hidden), f32)).astype(bf16),
        "b_qkv": jnp.zeros((1, 3 * hidden), f32),
        "w_proj": (std * jax.random.normal(ks[1], (hidden, hidden), f32)).astype(bf16),
        "b_proj": jnp.zeros((1, hidden), f32),
        "ln2_g": jnp.ones((1, hidden), f32),
        "ln2_b": jnp.zeros((1, hidden), f32),
        "w_fc1": (std * jax.random.normal(ks[2], (hidden, ffn_hidden), f32)).astype(bf16),
        "b_fc1": jnp.zeros((1, ffn_hidden), f32),
        "w_fc2": (std * jax.random.normal(ks[3], (ffn_hidden, hidden), f32)).astype(bf16),
        "b_fc2": jnp.zeros((1, hidden), f32),
    }


# ----------------------------- main --------------------------------------------

if __name__ == "__main__":
    S, B = 8, 2
    hidden, ffn_hidden, num_heads = 32, 64, 4

    key = jax.random.PRNGKey(0)
    kx, kp = jax.random.split(key)

    x = jax.random.normal(kx, (S, B, hidden), dtype=jnp.float32)

    # causal mask (1 = masked out), shape [B, 1, S, S], int32
    causal = (jnp.arange(S)[:, None] < jnp.arange(S)[None, :]).astype(jnp.int32)
    attention_mask = jnp.broadcast_to(causal[None, None], (B, 1, S, S))

    params = init_params(kp, hidden, ffn_hidden)

    fwd = jax.jit(functools.partial(transformer_layer, num_heads=num_heads))
    out = fwd(x, attention_mask, params)
    jax.block_until_ready(out)

    assert out.shape == (S, B, hidden) and out.dtype == jnp.float32
    assert bool(jnp.all(jnp.isfinite(out)))
    print("KERNEL_OK")
</pallas_src>

<mosaic_0001>
module attributes {stable_mosaic.version = 11 : i64} {
  func.func @ln_qkv_kernel(%arg0: i32, %arg1: memref<16x32xf32, #tpu.memory_space<vmem>>, %arg2: memref<1x32xf32, #tpu.memory_space<vmem>>, %arg3: memref<1x32xf32, #tpu.memory_space<vmem>>, %arg4: memref<32x96xbf16, #tpu.memory_space<vmem>>, %arg5: memref<1x96xf32, #tpu.memory_space<vmem>>, %arg6: memref<16x32xbf16, #tpu.memory_space<vmem>>, %arg7: memref<16x32xbf16, #tpu.memory_space<vmem>>, %arg8: memref<16x32xbf16, #tpu.memory_space<vmem>>) attributes {dimension_semantics = [#tpu.dimension_semantics<parallel>], iteration_bounds = array<i64: 1>, scalar_prefetch = 0 : i64, scratch_operands = 0 : i64, tpu.core_type = #tpu.core_type<tc>, window_params = [{transform_indices = @transform_0, window_bounds = array<i64: 16, 32>}, {pipeline_mode = #tpu.pipeline_mode<synchronous>, transform_indices = @transform_1, window_bounds = array<i64: 1, 32>}, {pipeline_mode = #tpu.pipeline_mode<synchronous>, transform_indices = @transform_2, window_bounds = array<i64: 1, 32>}, {pipeline_mode = #tpu.pipeline_mode<synchronous>, transform_indices = @transform_3, window_bounds = array<i64: 32, 96>}, {pipeline_mode = #tpu.pipeline_mode<synchronous>, transform_indices = @transform_4, window_bounds = array<i64: 1, 96>}, {transform_indices = @transform_5, window_bounds = array<i64: 16, 32>}, {transform_indices = @transform_6, window_bounds = array<i64: 16, 32>}, {transform_indices = @transform_7, window_bounds = array<i64: 16, 32>}]} {
    %c0 = arith.constant 0 : index
    %c0_0 = arith.constant 0 : index
    %0 = vector.load %arg1[%c0, %c0_0] : memref<16x32xf32, #tpu.memory_space<vmem>>, vector<16x32xf32>
    %cst = arith.constant dense<0.000000e+00> : vector<16xf32>
    %1 = vector.multi_reduction <add>, %0, %cst [1] : vector<16x32xf32> to vector<16xf32>
    %2 = vector.shape_cast %1 : vector<16xf32> to vector<16x1xf32>
    %cst_1 = arith.constant 3.200000e+01 : f32
    %3 = vector.broadcast %cst_1 : f32 to vector<16x1xf32>
    %4 = arith.divf %2, %3 : vector<16x1xf32>
    %5 = vector.broadcast %4 : vector<16x1xf32> to vector<16x32xf32>
    %6 = arith.subf %0, %5 : vector<16x32xf32>
    %7 = arith.mulf %6, %6 : vector<16x32xf32>
    %cst_2 = arith.constant dense<0.000000e+00> : vector<16xf32>
    %8 = vector.multi_reduction <add>, %7, %cst_2 [1] : vector<16x32xf32> to vector<16xf32>
    %9 = vector.shape_cast %8 : vector<16xf32> to vector<16x1xf32>
    %cst_3 = arith.constant 3.200000e+01 : f32
    %10 = vector.broadcast %cst_3 : f32 to vector<16x1xf32>
    %11 = arith.divf %9, %10 : vector<16x1xf32>
    %12 = vector.broadcast %4 : vector<16x1xf32> to vector<16x32xf32>
    %13 = arith.subf %0, %12 : vector<16x32xf32>
    %cst_4 = arith.constant 9.99999974E-6 : f32
    %14 = vector.broadcast %cst_4 : f32 to vector<16x1xf32>
    %15 = arith.addf %11, %14 : vector<16x1xf32>
    %16 = math.rsqrt %15 : vector<16x1xf32>
    %17 = vector.broadcast %16 : vector<16x1xf32> to vector<16x32xf32>
    %18 = arith.mulf %13, %17 : vector<16x32xf32>
    %c0_5 = arith.constant 0 : index
    %c0_6 = arith.constant 0 : index
    %19 = vector.load %arg2[%c0_5, %c0_6] : memref<1x32xf32, #tpu.memory_space<vmem>>, vector<1x32xf32>
    %20 = vector.broadcast %19 : vector<1x32xf32> to vector<16x32xf32>
    %21 = arith.mulf %18, %20 : vector<16x32xf32>
    %c0_7 = arith.constant 0 : index
    %c0_8 = arith.constant 0 : index
    %22 = vector.load %arg3[%c0_7, %c0_8] : memref<1x32xf32, #tpu.memory_space<vmem>>, vector<1x32xf32>
    %23 = vector.broadcast %22 : vector<1x32xf32> to vector<16x32xf32>
    %24 = arith.addf %21, %23 : vector<16x32xf32>
    %25 = arith.truncf %24 : vector<16x32xf32> to vector<16x32xbf16>
    %c0_9 = arith.constant 0 : index
    %c0_10 = arith.constant 0 : index
    %26 = vector.load %arg4[%c0_9, %c0_10] : memref<32x96xbf16, #tpu.memory_space<vmem>>, vector<32x96xbf16>
    %cst_11 = arith.constant dense<0.000000e+00> : vector<16x96xf32>
    %27 = tpu.matmul %25, %26, %cst_11 {dimension_numbers = #tpu.dot_dimension_numbers<[1], [0], [0], [1], [0, 0, 1, 1], [], []>} : vector<16x32xbf16>, vector<32x96xbf16>, vector<16x96xf32> -> vector<16x96xf32>
    %c0_12 = arith.constant 0 : index
    %c0_13 = arith.constant 0 : index
    %28 = vector.load %arg5[%c0_12, %c0_13] : memref<1x96xf32, #tpu.memory_space<vmem>>, vector<1x96xf32>
    %29 = vector.broadcast %28 : vector<1x96xf32> to vector<16x96xf32>
    %30 = arith.addf %27, %29 : vector<16x96xf32>
    %31 = vector.shape_cast %30 : vector<16x96xf32> to vector<16x4x24xf32>
    %32 = vector.extract_strided_slice %31 {offsets = [0, 0, 0], sizes = [16, 4, 8], strides = [1, 1, 1]} : vector<16x4x24xf32> to vector<16x4x8xf32>
    %33 = vector.shape_cast %32 : vector<16x4x8xf32> to vector<16x32xf32>
    %34 = arith.truncf %33 : vector<16x32xf32> to vector<16x32xbf16>
    %c0_14 = arith.constant 0 : index
    %c0_15 = arith.constant 0 : index
    %35 = vector.load %arg6[%c0_14, %c0_15] : memref<16x32xbf16, #tpu.memory_space<vmem>>, vector<16x32xbf16>
    tpu.vector_store %arg6[%c0_14, %c0_15], %34 {strides = array<i32>} : memref<16x32xbf16, #tpu.memory_space<vmem>>, vector<16x32xbf16>,
    %36 = vector.extract_strided_slice %31 {offsets = [0, 0, 8], sizes = [16, 4, 8], strides = [1, 1, 1]} : vector<16x4x24xf32> to vector<16x4x8xf32>
    %37 = vector.shape_cast %36 : vector<16x4x8xf32> to vector<16x32xf32>
    %38 = arith.truncf %37 : vector<16x32xf32> to vector<16x32xbf16>
    %c0_16 = arith.constant 0 : index
    %c0_17 = arith.constant 0 : index
    %39 = vector.load %arg7[%c0_16, %c0_17] : memref<16x32xbf16, #tpu.memory_space<vmem>>, vector<16x32xbf16>
    tpu.vector_store %arg7[%c0_16, %c0_17], %38 {strides = array<i32>} : memref<16x32xbf16, #tpu.memory_space<vmem>>, vector<16x32xbf16>,
    %40 = vector.extract_strided_slice %31 {offsets = [0, 0, 16], sizes = [16, 4, 8], strides = [1, 1, 1]} : vector<16x4x24xf32> to vector<16x4x8xf32>
    %41 = vector.shape_cast %40 : vector<16x4x8xf32> to vector<16x32xf32>
    %42 = arith.truncf %41 : vector<16x32xf32> to vector<16x32xbf16>
    %c0_18 = arith.constant 0 : index
    %c0_19 = arith.constant 0 : index
    %43 = vector.load %arg8[%c0_18, %c0_19] : memref<16x32xbf16, #tpu.memory_space<vmem>>, vector<16x32xbf16>
    tpu.vector_store %arg8[%c0_18, %c0_19], %42 {strides = array<i32>} : memref<16x32xbf16, #tpu.memory_space<vmem>>, vector<16x32xbf16>,
    return
  }
  func.func @transform_0(%arg0: i32) -> (i32, i32) {
    %c0_i32 = arith.constant 0 : i32
    %c0_i32_0 = arith.constant 0 : i32
    return %arg0, %c0_i32 : i32, i32
  }
  func.func @transform_1(%arg0: i32) -> (i32, i32) {
    %c0_i32 = arith.constant 0 : i32
    %c0_i32_0 = arith.constant 0 : i32
    %c0_i32_1 = arith.constant 0 : i32
    return %c0_i32, %c0_i32_0 : i32, i32
  }
  func.func @transform_2(%arg0: i32) -> (i32, i32) {
    %c0_i32 = arith.constant 0 : i32
    %c0_i32_0 = arith.constant 0 : i32
    %c0_i32_1 = arith.constant 0 : i32
    return %c0_i32, %c0_i32_0 : i32, i32
  }
  func.func @transform_3(%arg0: i32) -> (i32, i32) {
    %c0_i32 = arith.constant 0 : i32
    %c0_i32_0 = arith.constant 0 : i32
    %c0_i32_1 = arith.constant 0 : i32
    return %c0_i32, %c0_i32_0 : i32, i32
  }
  func.func @transform_4(%arg0: i32) -> (i32, i32) {
    %c0_i32 = arith.constant 0 : i32
    %c0_i32_0 = arith.constant 0 : i32
    %c0_i32_1 = arith.constant 0 : i32
    return %c0_i32, %c0_i32_0 : i32, i32
  }
  func.func @transform_5(%arg0: i32) -> (i32, i32) {
    %c0_i32 = arith.constant 0 : i32
    %c0_i32_0 = arith.constant 0 : i32
    return %arg0, %c0_i32 : i32, i32
  }
  func.func @transform_6(%arg0: i32) -> (i32, i32) {
    %c0_i32 = arith.constant 0 : i32
    %c0_i32_0 = arith.constant 0 : i32
    return %arg0, %c0_i32 : i32, i32
  }
  func.func @transform_7(%arg0: i32) -> (i32, i32) {
    %c0_i32 = arith.constant 0 : i32
    %c0_i32_0 = arith.constant 0 : i32
    return %arg0, %c0_i32 : i32, i32
  }
}

module attributes {stable_mosaic.version = 11 : i64} {
  func.func @flash_attn_kernel(%arg0: i32, %arg1: i32, %arg2: i32, %arg3: memref<1x8x32xbf16, #tpu.memory_space<vmem>>, %arg4: memref<1x8x32xbf16, #tpu.memory_space<vmem>>, %arg5: memref<1x8x32xbf16, #tpu.memory_space<vmem>>, %arg6: memref<1x1x8x8xi32, #tpu.memory_space<vmem>>, %arg7: memref<1x8x32xbf16, #tpu.memory_space<vmem>>, %arg8: memref<4x8x1xf32, #tpu.memory_space<vmem>>, %arg9: memref<4x8x1xf32, #tpu.memory_space<vmem>>, %arg10: memref<4x8x8xf32, #tpu.memory_space<vmem>>) attributes {dimension_semantics = [#tpu.dimension_semantics<parallel>, #tpu.dimension_semantics<parallel>, #tpu.dimension_semantics<arbitrary>], iteration_bounds = array<i64: 2, 1, 1>, scalar_prefetch = 0 : i64, scratch_operands = 3 : i64, tpu.core_type = #tpu.core_type<tc>, window_params = [{transform_indices = @transform_0, window_bounds = array<i64: 1, 8, 32>}, {transform_indices = @transform_1, window_bounds = array<i64: 1, 8, 32>}, {transform_indices = @transform_2, window_bounds = array<i64: 1, 8, 32>}, {transform_indices = @transform_3, window_bounds = array<i64: 1, 1, 8, 8>}, {transform_indices = @transform_4, window_bounds = array<i64: 1, 8, 32>}]} {
    %c0_i32 = arith.constant 0 : i32
    %0 = arith.cmpi eq, %arg2, %c0_i32 : i32
    %1 = arith.extui %0 : i1 to i32
    %c0_i32_0 = arith.constant 0 : i32
    %2 = arith.cmpi ne, %1, %c0_i32_0 : i32
    scf.if %2 {
      %cst_39 = arith.constant 0xFF800000 : f32
      %50 = vector.broadcast %cst_39 : f32 to vector<4x8x1xf32>
      %c0_40 = arith.constant 0 : index
      %c0_41 = arith.constant 0 : index
      %c0_42 = arith.constant 0 : index
      %51 = vector.load %arg8[%c0_40, %c0_41, %c0_42] : memref<4x8x1xf32, #tpu.memory_space<vmem>>, vector<4x8x1xf32>
      tpu.vector_store %arg8[%c0_40, %c0_41, %c0_42], %50 {strides = array<i32>} : memref<4x8x1xf32, #tpu.memory_space<vmem>>, vector<4x8x1xf32>,
      %cst_43 = arith.constant 0.000000e+00 : f32
      %52 = vector.broadcast %cst_43 : f32 to vector<4x8x1xf32>
      %c0_44 = arith.constant 0 : index
      %c0_45 = arith.constant 0 : index
      %c0_46 = arith.constant 0 : index
      %53 = vector.load %arg9[%c0_44, %c0_45, %c0_46] : memref<4x8x1xf32, #tpu.memory_space<vmem>>, vector<4x8x1xf32>
      tpu.vector_store %arg9[%c0_44, %c0_45, %c0_46], %52 {strides = array<i32>} : memref<4x8x1xf32, #tpu.memory_space<vmem>>, vector<4x8x1xf32>,
      %cst_47 = arith.constant 0.000000e+00 : f32
      %54 = vector.broadcast %cst_47 : f32 to vector<4x8x8xf32>
      %c0_48 = arith.constant 0 : index
      %c0_49 = arith.constant 0 : index
      %c0_50 = arith.constant 0 : index
      %55 = vector.load %arg10[%c0_48, %c0_49, %c0_50] : memref<4x8x8xf32, #tpu.memory_space<vmem>>, vector<4x8x8xf32>
      tpu.vector_store %arg10[%c0_48, %c0_49, %c0_50], %54 {strides = array<i32>} : memref<4x8x8xf32, #tpu.memory_space<vmem>>, vector<4x8x8xf32>,
    } else {
    }
    %c0 = arith.constant 0 : index
    %c0_1 = arith.constant 0 : index
    %c0_2 = arith.constant 0 : index
    %3 = vector.load %arg3[%c0, %c0_1, %c0_2] : memref<1x8x32xbf16, #tpu.memory_space<vmem>>, vector<1x8x32xbf16>
    %4 = vector.shape_cast %3 : vector<1x8x32xbf16> to vector<8x32xbf16>
    %5 = vector.shape_cast %4 : vector<8x32xbf16> to vector<8x4x8xbf16>
    %c0_3 = arith.constant 0 : index
    %c0_4 = arith.constant 0 : index
    %c0_5 = arith.constant 0 : index
    %6 = vector.load %arg4[%c0_3, %c0_4, %c0_5] : memref<1x8x32xbf16, #tpu.memory_space<vmem>>, vector<1x8x32xbf16>
    %7 = vector.shape_cast %6 : vector<1x8x32xbf16> to vector<8x32xbf16>
    %8 = vector.shape_cast %7 : vector<8x32xbf16> to vector<8x4x8xbf16>
    %c0_6 = arith.constant 0 : index
    %c0_7 = arith.constant 0 : index
    %c0_8 = arith.constant 0 : index
    %9 = vector.load %arg5[%c0_6, %c0_7, %c0_8] : memref<1x8x32xbf16, #tpu.memory_space<vmem>>, vector<1x8x32xbf16>
    %10 = vector.shape_cast %9 : vector<1x8x32xbf16> to vector<8x32xbf16>
    %11 = vector.shape_cast %10 : vector<8x32xbf16> to vector<8x4x8xbf16>
    %cst = arith.constant dense<0.000000e+00> : vector<4x8x8xf32>
    %12 = tpu.matmul %5, %8, %cst {dimension_numbers = #tpu.dot_dimension_numbers<[2], [2], [0], [0], [0, 1, 0, 0, 1, 0], [1], [1]>} : vector<8x4x8xbf16>, vector<8x4x8xbf16>, vector<4x8x8xf32> -> vector<4x8x8xf32>
    %cst_9 = arith.constant 0.353553385 : f32
    %13 = vector.broadcast %cst_9 : f32 to vector<4x8x8xf32>
    %14 = arith.mulf %12, %13 : vector<4x8x8xf32>
    %c0_10 = arith.constant 0 : index
    %c0_11 = arith.constant 0 : index
    %c0_12 = arith.constant 0 : index
    %c0_13 = arith.constant 0 : index
    %15 = vector.load %arg6[%c0_10, %c0_11, %c0_12, %c0_13] : memref<1x1x8x8xi32, #tpu.memory_space<vmem>>, vector<1x1x8x8xi32>
    %16 = vector.shape_cast %15 : vector<1x1x8x8xi32> to vector<8x8xi32>
    %17 = vector.shape_cast %16 : vector<8x8xi32> to vector<1x8x8xi32>
    %c0_i32_14 = arith.constant 0 : i32
    %18 = vector.broadcast %c0_i32_14 : i32 to vector<1x8x8xi32>
    %19 = arith.cmpi ne, %17, %18 : vector<1x8x8xi32>
    %cst_15 = arith.constant -1.000000e+30 : f32
    %20 = vector.shape_cast %19 : vector<1x8x8xi1> to vector<1x8x8xi1>
    %21 = vector.broadcast %20 : vector<1x8x8xi1> to vector<4x8x8xi1>
    %22 = vector.broadcast %cst_15 : f32 to vector<4x8x8xf32>
    %23 = arith.select %21, %22, %14 : vector<4x8x8xi1>, vector<4x8x8xf32>
    %c0_16 = arith.constant 0 : index
    %c0_17 = arith.constant 0 : index
    %c0_18 = arith.constant 0 : index
    %24 = vector.load %arg8[%c0_16, %c0_17, %c0_18] : memref<4x8x1xf32, #tpu.memory_space<vmem>>, vector<4x8x1xf32>
    %cst_19 = arith.constant dense<0xFF800000> : vector<4x8xf32>
    %25 = vector.multi_reduction <maximumf>, %23, %cst_19 [2] : vector<4x8x8xf32> to vector<4x8xf32>
    %26 = vector.shape_cast %25 : vector<4x8xf32> to vector<4x8x1xf32>
    %27 = arith.maximumf %24, %26 : vector<4x8x1xf32>
    %28 = arith.subf %24, %27 : vector<4x8x1xf32>
    %29 = math.exp %28 : vector<4x8x1xf32>
    %30 = vector.broadcast %27 : vector<4x8x1xf32> to vector<4x8x8xf32>
    %31 = arith.subf %23, %30 : vector<4x8x8xf32>
    %32 = math.exp %31 : vector<4x8x8xf32>
    %c0_20 = arith.constant 0 : index
    %c0_21 = arith.constant 0 : index
    %c0_22 = arith.constant 0 : index
    %33 = vector.load %arg9[%c0_20, %c0_21, %c0_22] : memref<4x8x1xf32, #tpu.memory_space<vmem>>, vector<4x8x1xf32>
    %34 = arith.mulf %29, %33 : vector<4x8x1xf32>
    %cst_23 = arith.constant dense<0.000000e+00> : vector<4x8xf32>
    %35 = vector.multi_reduction <add>, %32, %cst_23 [2] : vector<4x8x8xf32> to vector<4x8xf32>
    %36 = vector.shape_cast %35 : vector<4x8xf32> to vector<4x8x1xf32>
    %37 = arith.addf %34, %36 : vector<4x8x1xf32>
    %c0_24 = arith.constant 0 : index
    %c0_25 = arith.constant 0 : index
    %c0_26 = arith.constant 0 : index
    %38 = vector.load %arg9[%c0_24, %c0_25, %c0_26] : memref<4x8x1xf32, #tpu.memory_space<vmem>>, vector<4x8x1xf32>
    tpu.vector_store %arg9[%c0_24, %c0_25, %c0_26], %37 {strides = array<i32>} : memref<4x8x1xf32, #tpu.memory_space<vmem>>, vector<4x8x1xf32>,
    %39 = arith.truncf %32 : vector<4x8x8xf32> to vector<4x8x8xbf16>
    %cst_27 = arith.constant dense<0.000000e+00> : vector<4x8x8xf32>
    %40 = tpu.matmul %39, %11, %cst_27 {dimension_numbers = #tpu.dot_dimension_numbers<[2], [0], [1], [2], [0, 0, 0, 1, 1, 2], [0], [1]>} : vector<4x8x8xbf16>, vector<8x4x8xbf16>, vector<4x8x8xf32> -> vector<4x8x8xf32>
    %c0_28 = arith.constant 0 : index
    %c0_29 = arith.constant 0 : index
    %c0_30 = arith.constant 0 : index
    %41 = vector.load %arg10[%c0_28, %c0_29, %c0_30] : memref<4x8x8xf32, #tpu.memory_space<vmem>>, vector<4x8x8xf32>
    %42 = vector.broadcast %29 : vector<4x8x1xf32> to vector<4x8x8xf32>
    %43 = arith.mulf %42, %41 : vector<4x8x8xf32>
    %44 = arith.addf %43, %40 : vector<4x8x8xf32>
    %c0_31 = arith.constant 0 : index
    %c0_32 = arith.constant 0 : index
    %c0_33 = arith.constant 0 : index
    %45 = vector.load %arg10[%c0_31, %c0_32, %c0_33] : memref<4x8x8xf32, #tpu.memory_space<vmem>>, vector<4x8x8xf32>
    tpu.vector_store %arg10[%c0_31, %c0_32, %c0_33], %44 {strides = array<i32>} : memref<4x8x8xf32, #tpu.memory_space<vmem>>, vector<4x8x8xf32>,
    %c0_34 = arith.constant 0 : index
    %c0_35 = arith.constant 0 : index
    %c0_36 = arith.constant 0 : index
    %46 = vector.load %arg8[%c0_34, %c0_35, %c0_36] : memref<4x8x1xf32, #tpu.memory_space<vmem>>, vector<4x8x1xf32>
    tpu.vector_store %arg8[%c0_34, %c0_35, %c0_36], %27 {strides = array<i32>} : memref<4x8x1xf32, #tpu.memory_space<vmem>>, vector<4x8x1xf32>,
    %c0_i32_37 = arith.constant 0 : i32
    %47 = arith.cmpi eq, %arg2, %c0_i32_37 : i32
    %48 = arith.extui %47 : i1 to i32
    %c0_i32_38 = arith.constant 0 : i32
    %49 = arith.cmpi ne, %48, %c0_i32_38 : i32
    scf.if %49 {
      %c0_39 = arith.constant 0 : index
      %c0_40 = arith.constant 0 : index
      %c0_41 = arith.constant 0 : index
      %50 = vector.load %arg9[%c0_39, %c0_40, %c0_41] : memref<4x8x1xf32, #tpu.memory_space<vmem>>, vector<4x8x1xf32>
      %51 = tpu.reciprocal %50 {approx = true} : vector<4x8x1xf32> -> vector<4x8x1xf32>
      %c0_42 = arith.constant 0 : index
      %c0_43 = arith.constant 0 : index
      %c0_44 = arith.constant 0 : index
      %52 = vector.load %arg10[%c0_42, %c0_43, %c0_44] : memref<4x8x8xf32, #tpu.memory_space<vmem>>, vector<4x8x8xf32>
      %53 = vector.broadcast %51 : vector<4x8x1xf32> to vector<4x8x8xf32>
      %54 = arith.mulf %52, %53 : vector<4x8x8xf32>
      %55 = tpu.transpose %54, [1, 0, 2] : vector<4x8x8xf32> -> vector<8x4x8xf32>
      %56 = vector.shape_cast %55 : vector<8x4x8xf32> to vector<8x32xf32>
      %57 = arith.truncf %56 : vector<8x32xf32> to vector<8x32xbf16>
      %c0_45 = arith.constant 0 : index
      %c0_46 = arith.constant 0 : index
      %c0_47 = arith.constant 0 : index
      %58 = vector.load %arg7[%c0_45, %c0_46, %c0_47] : memref<1x8x32xbf16, #tpu.memory_space<vmem>>, vector<1x8x32xbf16>
      %59 = vector.shape_cast %58 : vector<1x8x32xbf16> to vector<8x32xbf16>
      %60 = vector.shape_cast %57 : vector<8x32xbf16> to vector<1x8x32xbf16>
      tpu.vector_store %arg7[%c0_45, %c0_46, %c0_47], %60 {strides = array<i32>} : memref<1x8x32xbf16, #tpu.memory_space<vmem>>, vector<1x8x32xbf16>,
    } else {
    }
    return
  }
  func.func @transform_0(%arg0: i32, %arg1: i32, %arg2: i32) -> (i32, i32, i32) {
    %c0_i32 = arith.constant 0 : i32
    %c0_i32_0 = arith.constant 0 : i32
    return %arg0, %arg1, %c0_i32 : i32, i32, i32
  }
  func.func @transform_1(%arg0: i32, %arg1: i32, %arg2: i32) -> (i32, i32, i32) {
    %c0_i32 = arith.constant 0 : i32
    %c0_i32_0 = arith.constant 0 : i32
    return %arg0, %arg2, %c0_i32 : i32, i32, i32
  }
  func.func @transform_2(%arg0: i32, %arg1: i32, %arg2: i32) -> (i32, i32, i32) {
    %c0_i32 = arith.constant 0 : i32
    %c0_i32_0 = arith.constant 0 : i32
    return %arg0, %arg2, %c0_i32 : i32, i32, i32
  }
  func.func @transform_3(%arg0: i32, %arg1: i32, %arg2: i32) -> (i32, i32, i32, i32) {
    %c0_i32 = arith.constant 0 : i32
    %c0_i32_0 = arith.constant 0 : i32
    return %arg0, %c0_i32, %arg1, %arg2 : i32, i32, i32, i32
  }
  func.func @transform_4(%arg0: i32, %arg1: i32, %arg2: i32) -> (i32, i32, i32) {
    %c0_i32 = arith.constant 0 : i32
    %c0_i32_0 = arith.constant 0 : i32
    return %arg0, %arg1, %c0_i32 : i32, i32, i32
  }
}

module attributes {stable_mosaic.version = 11 : i64} {
  func.func @proj_mlp_kernel(%arg0: i32, %arg1: memref<16x32xbf16, #tpu.memory_space<vmem>>, %arg2: memref<16x32xf32, #tpu.memory_space<vmem>>, %arg3: memref<32x32xbf16, #tpu.memory_space<vmem>>, %arg4: memref<1x32xf32, #tpu.memory_space<vmem>>, %arg5: memref<1x32xf32, #tpu.memory_space<vmem>>, %arg6: memref<1x32xf32, #tpu.memory_space<vmem>>, %arg7: memref<32x64xbf16, #tpu.memory_space<vmem>>, %arg8: memref<1x64xf32, #tpu.memory_space<vmem>>, %arg9: memref<64x32xbf16, #tpu.memory_space<vmem>>, %arg10: memref<1x32xf32, #tpu.memory_space<vmem>>, %arg11: memref<16x32xf32, #tpu.memory_space<vmem>>) attributes {dimension_semantics = [#tpu.dimension_semantics<parallel>], iteration_bounds = array<i64: 1>, scalar_prefetch = 0 : i64, scratch_operands = 0 : i64, tpu.core_type = #tpu.core_type<tc>, window_params = [{transform_indices = @transform_0, window_bounds = array<i64: 16, 32>}, {transform_indices = @transform_1, window_bounds = array<i64: 16, 32>}, {pipeline_mode = #tpu.pipeline_mode<synchronous>, transform_indices = @transform_2, window_bounds = array<i64: 32, 32>}, {pipeline_mode = #tpu.pipeline_mode<synchronous>, transform_indices = @transform_3, window_bounds = array<i64: 1, 32>}, {pipeline_mode = #tpu.pipeline_mode<synchronous>, transform_indices = @transform_4, window_bounds = array<i64: 1, 32>}, {pipeline_mode = #tpu.pipeline_mode<synchronous>, transform_indices = @transform_5, window_bounds = array<i64: 1, 32>}, {pipeline_mode = #tpu.pipeline_mode<synchronous>, transform_indices = @transform_6, window_bounds = array<i64: 32, 64>}, {pipeline_mode = #tpu.pipeline_mode<synchronous>, transform_indices = @transform_7, window_bounds = array<i64: 1, 64>}, {pipeline_mode = #tpu.pipeline_mode<synchronous>, transform_indices = @transform_8, window_bounds = array<i64: 64, 32>}, {pipeline_mode = #tpu.pipeline_mode<synchronous>, transform_indices = @transform_9, window_bounds = array<i64: 1, 32>}, {transform_indices = @transform_10, window_bounds = array<i64: 16, 32>}]} {
    %c0 = arith.constant 0 : index
    %c0_0 = arith.constant 0 : index
    %0 = vector.load %arg1[%c0, %c0_0] : memref<16x32xbf16, #tpu.memory_space<vmem>>, vector<16x32xbf16>
    %c0_1 = arith.constant 0 : index
    %c0_2 = arith.constant 0 : index
    %1 = vector.load %arg3[%c0_1, %c0_2] : memref<32x32xbf16, #tpu.memory_space<vmem>>, vector<32x32xbf16>
    %cst = arith.constant dense<0.000000e+00> : vector<16x32xf32>
    %2 = tpu.matmul %0, %1, %cst {dimension_numbers = #tpu.dot_dimension_numbers<[1], [0], [0], [1], [0, 0, 1, 1], [], []>} : vector<16x32xbf16>, vector<32x32xbf16>, vector<16x32xf32> -> vector<16x32xf32>
    %c0_3 = arith.constant 0 : index
    %c0_4 = arith.constant 0 : index
    %3 = vector.load %arg4[%c0_3, %c0_4] : memref<1x32xf32, #tpu.memory_space<vmem>>, vector<1x32xf32>
    %4 = vector.broadcast %3 : vector<1x32xf32> to vector<16x32xf32>
    %5 = arith.addf %2, %4 : vector<16x32xf32>
    %c0_5 = arith.constant 0 : index
    %c0_6 = arith.constant 0 : index
    %6 = vector.load %arg2[%c0_5, %c0_6] : memref<16x32xf32, #tpu.memory_space<vmem>>, vector<16x32xf32>
    %7 = arith.addf %5, %6 : vector<16x32xf32>
    %cst_7 = arith.constant dense<0.000000e+00> : vector<16xf32>
    %8 = vector.multi_reduction <add>, %7, %cst_7 [1] : vector<16x32xf32> to vector<16xf32>
    %9 = vector.shape_cast %8 : vector<16xf32> to vector<16x1xf32>
    %cst_8 = arith.constant 3.200000e+01 : f32
    %10 = vector.broadcast %cst_8 : f32 to vector<16x1xf32>
    %11 = arith.divf %9, %10 : vector<16x1xf32>
    %12 = vector.broadcast %11 : vector<16x1xf32> to vector<16x32xf32>
    %13 = arith.subf %7, %12 : vector<16x32xf32>
    %14 = arith.mulf %13, %13 : vector<16x32xf32>
    %cst_9 = arith.constant dense<0.000000e+00> : vector<16xf32>
    %15 = vector.multi_reduction <add>, %14, %cst_9 [1] : vector<16x32xf32> to vector<16xf32>
    %16 = vector.shape_cast %15 : vector<16xf32> to vector<16x1xf32>
    %cst_10 = arith.constant 3.200000e+01 : f32
    %17 = vector.broadcast %cst_10 : f32 to vector<16x1xf32>
    %18 = arith.divf %16, %17 : vector<16x1xf32>
    %19 = vector.broadcast %11 : vector<16x1xf32> to vector<16x32xf32>
    %20 = arith.subf %7, %19 : vector<16x32xf32>
    %cst_11 = arith.constant 9.99999974E-6 : f32
    %21 = vector.broadcast %cst_11 : f32 to vector<16x1xf32>
    %22 = arith.addf %18, %21 : vector<16x1xf32>
    %23 = math.rsqrt %22 : vector<16x1xf32>
    %24 = vector.broadcast %23 : vector<16x1xf32> to vector<16x32xf32>
    %25 = arith.mulf %20, %24 : vector<16x32xf32>
    %c0_12 = arith.constant 0 : index
    %c0_13 = arith.constant 0 : index
    %26 = vector.load %arg5[%c0_12, %c0_13] : memref<1x32xf32, #tpu.memory_space<vmem>>, vector<1x32xf32>
    %27 = vector.broadcast %26 : vector<1x32xf32> to vector<16x32xf32>
    %28 = arith.mulf %25, %27 : vector<16x32xf32>
    %c0_14 = arith.constant 0 : index
    %c0_15 = arith.constant 0 : index
    %29 = vector.load %arg6[%c0_14, %c0_15] : memref<1x32xf32, #tpu.memory_space<vmem>>, vector<1x32xf32>
    %30 = vector.broadcast %29 : vector<1x32xf32> to vector<16x32xf32>
    %31 = arith.addf %28, %30 : vector<16x32xf32>
    %32 = arith.truncf %31 : vector<16x32xf32> to vector<16x32xbf16>
    %c0_16 = arith.constant 0 : index
    %c0_17 = arith.constant 0 : index
    %33 = vector.load %arg7[%c0_16, %c0_17] : memref<32x64xbf16, #tpu.memory_space<vmem>>, vector<32x64xbf16>
    %cst_18 = arith.constant dense<0.000000e+00> : vector<16x64xf32>
    %34 = tpu.matmul %32, %33, %cst_18 {dimension_numbers = #tpu.dot_dimension_numbers<[1], [0], [0], [1], [0, 0, 1, 1], [], []>} : vector<16x32xbf16>, vector<32x64xbf16>, vector<16x64xf32> -> vector<16x64xf32>
    %c0_19 = arith.constant 0 : index
    %c0_20 = arith.constant 0 : index
    %35 = vector.load %arg8[%c0_19, %c0_20] : memref<1x64xf32, #tpu.memory_space<vmem>>, vector<1x64xf32>
    %36 = vector.broadcast %35 : vector<1x64xf32> to vector<16x64xf32>
    %37 = arith.addf %34, %36 : vector<16x64xf32>
    %38 = arith.mulf %37, %37 : vector<16x64xf32>
    %39 = arith.mulf %37, %38 : vector<16x64xf32>
    %cst_21 = arith.constant 4.471500e-02 : f32
    %40 = vector.broadcast %cst_21 : f32 to vector<16x64xf32>
    %41 = arith.mulf %40, %39 : vector<16x64xf32>
    %42 = arith.addf %37, %41 : vector<16x64xf32>
    %cst_22 = arith.constant 0.797884583 : f32
    %43 = vector.broadcast %cst_22 : f32 to vector<16x64xf32>
    %44 = arith.mulf %43, %42 : vector<16x64xf32>
    %45 = math.tanh %44 : vector<16x64xf32>
    %cst_23 = arith.constant 1.000000e+00 : f32
    %46 = vector.broadcast %cst_23 : f32 to vector<16x64xf32>
    %47 = arith.addf %46, %45 : vector<16x64xf32>
    %cst_24 = arith.constant 5.000000e-01 : f32
    %48 = vector.broadcast %cst_24 : f32 to vector<16x64xf32>
    %49 = arith.mulf %48, %47 : vector<16x64xf32>
    %50 = arith.mulf %37, %49 : vector<16x64xf32>
    %51 = arith.truncf %50 : vector<16x64xf32> to vector<16x64xbf16>
    %c0_25 = arith.constant 0 : index
    %c0_26 = arith.constant 0 : index
    %52 = vector.load %arg9[%c0_25, %c0_26] : memref<64x32xbf16, #tpu.memory_space<vmem>>, vector<64x32xbf16>
    %cst_27 = arith.constant dense<0.000000e+00> : vector<16x32xf32>
    %53 = tpu.matmul %51, %52, %cst_27 {dimension_numbers = #tpu.dot_dimension_numbers<[1], [0], [0], [1], [0, 0, 1, 1], [], []>} : vector<16x64xbf16>, vector<64x32xbf16>, vector<16x32xf32> -> vector<16x32xf32>
    %c0_28 = arith.constant 0 : index
    %c0_29 = arith.constant 0 : index
    %54 = vector.load %arg10[%c0_28, %c0_29] : memref<1x32xf32, #tpu.memory_space<vmem>>, vector<1x32xf32>
    %55 = vector.broadcast %54 : vector<1x32xf32> to vector<16x32xf32>
    %56 = arith.addf %53, %55 : vector<16x32xf32>
    %57 = arith.addf %56, %7 : vector<16x32xf32>
    %c0_30 = arith.constant 0 : index
    %c0_31 = arith.constant 0 : index
    %58 = vector.load %arg11[%c0_30, %c0_31] : memref<16x32xf32, #tpu.memory_space<vmem>>, vector<16x32xf32>
    tpu.vector_store %arg11[%c0_30, %c0_31], %57 {strides = array<i32>} : memref<16x32xf32, #tpu.memory_space<vmem>>, vector<16x32xf32>,
    return
  }
  func.func @transform_0(%arg0: i32) -> (i32, i32) {
    %c0_i32 = arith.constant 0 : i32
    %c0_i32_0 = arith.constant 0 : i32
    return %arg0, %c0_i32 : i32, i32
  }
  func.func @transform_1(%arg0: i32) -> (i32, i32) {
    %c0_i32 = arith.constant 0 : i32
    %c0_i32_0 = arith.constant 0 : i32
    return %arg0, %c0_i32 : i32, i32
  }
  func.func @transform_2(%arg0: i32) -> (i32, i32) {
    %c0_i32 = arith.constant 0 : i32
    %c0_i32_0 = arith.constant 0 : i32
    %c0_i32_1 = arith.constant 0 : i32
    return %c0_i32, %c0_i32_0 : i32, i32
  }
  func.func @transform_3(%arg0: i32) -> (i32, i32) {
    %c0_i32 = arith.constant 0 : i32
    %c0_i32_0 = arith.constant 0 : i32
    %c0_i32_1 = arith.constant 0 : i32
    return %c0_i32, %c0_i32_0 : i32, i32
  }
  func.func @transform_4(%arg0: i32) -> (i32, i32) {
    %c0_i32 = arith.constant 0 : i32
    %c0_i32_0 = arith.constant 0 : i32
    %c0_i32_1 = arith.constant 0 : i32
    return %c0_i32, %c0_i32_0 : i32, i32
  }
  func.func @transform_5(%arg0: i32) -> (i32, i32) {
    %c0_i32 = arith.constant 0 : i32
    %c0_i32_0 = arith.constant 0 : i32
    %c0_i32_1 = arith.constant 0 : i32
    return %c0_i32, %c0_i32_0 : i32, i32
  }
  func.func @transform_6(%arg0: i32) -> (i32, i32) {
    %c0_i32 = arith.constant 0 : i32
    %c0_i32_0 = arith.constant 0 : i32
    %c0_i32_1 = arith.constant 0 : i32
    return %c0_i32, %c0_i32_0 : i32, i32
  }
  func.func @transform_7(%arg0: i32) -> (i32, i32) {
    %c0_i32 = arith.constant 0 : i32
    %c0_i32_0 = arith.constant 0 : i32
    %c0_i32_1 = arith.constant 0 : i32
    return %c0_i32, %c0_i32_0 : i32, i32
  }
  func.func @transform_8(%arg0: i32) -> (i32, i32) {
    %c0_i32 = arith.constant 0 : i32
    %c0_i32_0 = arith.constant 0 : i32
    %c0_i32_1 = arith.constant 0 : i32
    return %c0_i32, %c0_i32_0 : i32, i32
  }
  func.func @transform_9(%arg0: i32) -> (i32, i32) {
    %c0_i32 = arith.constant 0 : i32
    %c0_i32_0 = arith.constant 0 : i32
    %c0_i32_1 = arith.constant 0 : i32
    return %c0_i32, %c0_i32_0 : i32, i32
  }
  func.func @transform_10(%arg0: i32) -> (i32, i32) {
    %c0_i32 = arith.constant 0 : i32
    %c0_i32_0 = arith.constant 0 : i32
    return %arg0, %c0_i32 : i32, i32
  }
}

</mosaic_0001>

<llo_original>
// kernel: transformer_layer.3
$region0: #{transformer_layer.3}
  #allocation0 [shape = 'u32[]', space=smem, size = 0x4, offset = 0x4, fixed_abs, tag = 'smem constant byte address 0x4 - core index']
  #allocation1 [shape = 'u32[72,128]{1,0:T(1,128)}', space=vmem, size = 0x9000, scoped, tag = 'internal scratch']
  %s0 = inlined_call_operand.vmem [shape: f32[16,32], index: 0, kind: input, shape index: {}]
  %s1 = inlined_call_operand.vmem [shape: f32[1,32], index: 1, kind: input, shape index: {}]
  %s2 = inlined_call_operand.vmem [shape: f32[1,32], index: 2, kind: input, shape index: {}]
  %s3 = inlined_call_operand.vmem [shape: bf16[32,96], index: 3, kind: input, shape index: {}]
  %s4 = inlined_call_operand.vmem [shape: f32[1,96], index: 4, kind: input, shape index: {}]
  %s5 = inlined_call_operand.vmem [shape: bf16[16,32], index: 5, kind: output, shape index: {0}]
  %s6 = inlined_call_operand.vmem [shape: bf16[16,32], index: 6, kind: output, shape index: {1}]
  %s7 = inlined_call_operand.vmem [shape: bf16[16,32], index: 7, kind: output, shape index: {2}]
  %8 = xla_tuple %s5, %s6, %s7
  %s9 = sld [smem:[#allocation0]]
  $region46: #{transformer_layer.3} parent=0
    _
  %s11 = ssub.s32 1, %s9
  %s12 = scalar_select 0, %s11, %s9
  // Predicated region
  $region2: #{transformer_layer.3} parent=0 // pred_check
    _
  $region3: #{transformer_layer.3} parent=0 // pred_check_branch
    %14 = sbr.rel (0) target = $region5
  $region4: #{transformer_layer.3} parent=0 // pred_region
    _
  $region5: #{transformer_layer.3} parent=0 // pred_fallthru
    _
  // Predicated region
  $region6: #{transformer_layer.3} parent=0 // pred_check
    _
  $region7: #{transformer_layer.3} parent=0 // pred_check_branch
    %16 = sbr.rel (0) target = $region9
  $region8: #{transformer_layer.3} parent=0 // pred_region
    _
  $region9: #{transformer_layer.3} parent=0 // pred_fallthru
    _
  // Predicated region
  $region10: #{transformer_layer.3} parent=0 // pred_check
    _
  $region11: #{transformer_layer.3} parent=0 // pred_check_branch
    %18 = sbr.rel (0) target = $region13
  $region12: #{transformer_layer.3} parent=0 // pred_region
    _
  $region13: #{transformer_layer.3} parent=0 // pred_fallthru
    _
  // Predicated region
  $region14: #{transformer_layer.3} parent=0 // pred_check
    _
  $region15: #{transformer_layer.3} parent=0 // pred_check_branch
    %20 = sbr.rel (0) target = $region17
  $region16: #{transformer_layer.3} parent=0 // pred_region
    _
  $region17: #{transformer_layer.3} parent=0 // pred_fallthru
    _
  // Predicated region
  $region18: #{transformer_layer.3} parent=0 // pred_check
    _
  $region19: #{transformer_layer.3} parent=0 // pred_check_branch
    %22 = sbr.rel (0) target = $region21
  $region20: #{transformer_layer.3} parent=0 // pred_region
    _
  $region21: #{transformer_layer.3} parent=0 // pred_fallthru
    _
  %v24 = vld [vmem:[%s0] sm:$0xff]
  %v25 = vld [vmem:[%s0 + $0x8] sm:$0xff]
  %vm26 = vcmask 261120
  %v27 = vsel %vm26, %v24, 0.0
  %28 = vadd.xlane.f32.xlu0 %v27
  %v29 = vpop.xlane.xlu0 %28
  %v30 = vsel %vm26, %v25, 0.0
  %31 = vadd.xlane.f32.xlu0 %v30
  %v32 = vpop.xlane.xlu0 %31
  %v33 = vrcp.pop 32.0
  %v34 = vmul.f32 32.0, %v33
  %v35 = vsub.f32 1.0, %v34
  %v36 = vmul.f32 %v33, %v35
  %v37 = vadd.f32 %v33, %v36
  %vm38 = vweird.f32 %v33
  %v39 = vsel %vm38, %v33, %v37
  %v40 = vmul.f32 %v29, %v39
  %v41 = vmul.f32 %v32, %v39
  %v42 = vsub.f32 %v24, %v40
  %v43 = vsub.f32 %v25, %v41
  %v44 = vmul.f32 %v42, %v42
  %v45 = vmul.f32 %v43, %v43
  %v46 = vsel %vm26, %v44, 0.0
  %47 = vadd.xlane.f32.xlu0 %v46
  %v48 = vpop.xlane.xlu0 %47
  %v49 = vsel %vm26, %v45, 0.0
  %50 = vadd.xlane.f32.xlu0 %v49
  %v51 = vpop.xlane.xlu0 %50
  %v52 = vmul.f32 %v48, %v39
  %v53 = vmul.f32 %v51, %v39
  %v54 = vadd.f32 %v52, 1e-05
  %v55 = vadd.f32 %v53, 1e-05
  %v56 = vrsqrt.pop %v54
  %v57 = vmul.f32 %v56, %v54
  %v58 = vmul.f32 %v57, %v56
  %v59 = vmul.f32 0.5, %v58
  %v60 = vsub.f32 1.5, %v59
  %v61 = vmul.f32 %v56, %v60
  %vm62 = vweird.f32 %v54
  %vm63 = vweird.f32 %v56
  %vm64 = vmor %vm62, %vm63
  %v65 = vsel %vm64, %v56, %v61
  %v66 = vrsqrt.pop %v55
  %v67 = vmul.f32 %v66, %v55
  %v68 = vmul.f32 %v67, %v66
  %v69 = vmul.f32 0.5, %v68
  %v70 = vsub.f32 1.5, %v69
  %v71 = vmul.f32 %v66, %v70
  %vm72 = vweird.f32 %v55
  %vm73 = vweird.f32 %v66
  %vm74 = vmor %vm72, %vm73
  %v75 = vsel %vm74, %v66, %v71
  %v76 = vmul.f32 %v42, %v65
  %v77 = vmul.f32 %v43, %v75
  %v78 = vld [vmem:[%s1] sm:$0x1]
  %v80 = vperm.slane %v78, 0
  %v82 = vmul.f32 %v76, %v80
  %v83 = vmul.f32 %v77, %v80
  %v84 = vld [vmem:[%s2] sm:$0x1]
  %v86 = vperm.slane %v84, 0
  %v88 = vadd.f32 %v82, %v86
  %v89 = vadd.f32 %v83, %v86
  %v90 = vpack.c.bf16 %v89, %v88
  %v91 = vld [vmem:[%s3] sm:$0xf]
  %v92 = vld [vmem:[%s3 + $0x4] sm:$0xf]
  %v93 = vld [vmem:[%s3 + $0x8] sm:$0xf]
  %v94 = vld [vmem:[%s3 + $0xc] sm:$0xf]
  %v95 = vld [vmem:[%s4] sm:$0x1]
  %v97 = vperm.slane %v95, 0
  %v103 = vunpack.c.l.b16 %v91
  %v104 = vunpack.c.l.b16 %v92
  %v105 = vunpack.c.l.b16 %v93
  %v106 = vunpack.c.l.b16 %v94
  %v107 = vpack.c.b16 %v104, %v103
  %v108 = vpack.c.b16 %v106, %v105
  %v112 = vsel %vm26, %v90, 0
  %114 = vmatpush.bf16.msra.mxu0 0
  %115 = vmatpush.bf16.msra.mxu0 0
  %116 = vmatpush.bf16.msra.mxu0 0
  %117 = vmatpush.bf16.msra.mxu0 0
  %118 = vmatpush.bf16.msra.mxu0 0
  %119 = vmatpush.bf16.msra.mxu0 0
  %120 = vmatpush.bf16.msra.mxu0 %v108
  %121 = vmatpush.bf16.msra.mxu0 %v107
  %122 = vmatmul.bf16.gmra.mxu0 %v112
  %v123 = vpop.f32.mrf.mxu0
  %v124 = vadd.f32 %v97, %v123
  %v125 = vpop.f32.mrf.mxu0
  %v126 = vadd.f32 %v97, %v125
  %127 = vdwg.mxu0
  %130 = vrot.lane.b32.xlu0 %v124, 104
  %v131 = vpop.permute.xlu0 %130
  %132 = vrot.lane.b32.xlu0 %v126, 104
  %v133 = vpop.permute.xlu0 %132
  %136 = vrot.lane.b32.xlu0 %v124, 80
  %v137 = vpop.permute.xlu0 %136
  %138 = vrot.lane.b32.xlu0 %v126, 80
  %v139 = vpop.permute.xlu0 %138
  %142 = vrot.lane.b32.xlu0 %v124, 56
  %v143 = vpop.permute.xlu0 %142
  %144 = vrot.lane.b32.xlu0 %v126, 56
  %v145 = vpop.permute.xlu0 %144
  %v148 = vrot.slane %v137, 4
  %vm149 = vcmask 1047556
  %v150 = vsel %vm149, %v148, %v124
  %v151 = vrot.slane %v124, 4
  %v152 = vsel %vm149, %v137, %v151
  %v154 = vunpack.c.l.s4 1983009808
  %v155 = vunpack.c.0.s8 %v154
  %v156 = vperm.slane %v150, %v155
  %v158 = vunpack.c.l.s4 1983009808
  %v159 = vunpack.c.0.s8 %v158
  %v160 = vperm.slane %v152, %v159
  %v161 = vrot.slane %v143, 4
  %v162 = vsel %vm149, %v161, %v131
  %v163 = vrot.slane %v131, 4
  %v164 = vsel %vm149, %v143, %v163
  %v166 = vunpack.c.l.s4 1983009808
  %v167 = vunpack.c.0.s8 %v166
  %v168 = vperm.slane %v162, %v167
  %v170 = vunpack.c.l.s4 1983009808
  %v171 = vunpack.c.0.s8 %v170
  %v172 = vperm.slane %v164, %v171
  %v173 = vrot.slane %v168, 4
  %v174 = vsel %vm149, %v173, %v156
  %v175 = vrot.slane %v156, 4
  %v176 = vsel %vm149, %v168, %v175
  %v178 = vunpack.c.l.s4 1934713408
  %v179 = vunpack.c.0.s8 %v178
  %v180 = vperm.slane %v174, %v179
  %v182 = vunpack.c.l.s4 1934713408
  %v183 = vunpack.c.0.s8 %v182
  %v184 = vperm.slane %v176, %v183
  %v185 = vrot.slane %v172, 4
  %v186 = vsel %vm149, %v185, %v160
  %v187 = vrot.slane %v160, 4
  %v188 = vsel %vm149, %v172, %v187
  %v190 = vunpack.c.l.s4 1934713408
  %v191 = vunpack.c.0.s8 %v190
  %v192 = vperm.slane %v186, %v191
  %v194 = vunpack.c.l.s4 1934713408
  %v195 = vunpack.c.0.s8 %v194
  %v196 = vperm.slane %v188, %v195
  %v197 = vrot.slane %v180, 4
  %v198 = vsel %vm149, 0.0, %v197
  %v199 = vrot.slane %v184, 4
  %v200 = vsel %vm149, 0.0, %v199
  %v201 = vrot.slane %v192, 4
  %v202 = vsel %vm149, 0.0, %v201
  %v203 = vrot.slane %v196, 4
  %v204 = vsel %vm149, 0.0, %v203
  %v205 = vrot.slane %v139, 4
  %v206 = vsel %vm149, %v205, %v126
  %v207 = vrot.slane %v126, 4
  %v208 = vsel %vm149, %v139, %v207
  %v210 = vunpack.c.l.s4 1983009808
  %v211 = vunpack.c.0.s8 %v210
  %v212 = vperm.slane %v206, %v211
  %v214 = vunpack.c.l.s4 1983009808
  %v215 = vunpack.c.0.s8 %v214
  %v216 = vperm.slane %v208, %v215
  %v217 = vrot.slane %v145, 4
  %v218 = vsel %vm149, %v217, %v133
  %v219 = vrot.slane %v133, 4
  %v220 = vsel %vm149, %v145, %v219
  %v222 = vunpack.c.l.s4 1983009808
  %v223 = vunpack.c.0.s8 %v222
  %v224 = vperm.slane %v218, %v223
  %v226 = vunpack.c.l.s4 1983009808
  %v227 = vunpack.c.0.s8 %v226
  %v228 = vperm.slane %v220, %v227
  %v229 = vrot.slane %v224, 4
  %v230 = vsel %vm149, %v229, %v212
  %v231 = vrot.slane %v212, 4
  %v232 = vsel %vm149, %v224, %v231
  %v234 = vunpack.c.l.s4 1934713408
  %v235 = vunpack.c.0.s8 %v234
  %v236 = vperm.slane %v230, %v235
  %v238 = vunpack.c.l.s4 1934713408
  %v239 = vunpack.c.0.s8 %v238
  %v240 = vperm.slane %v232, %v239
  %v241 = vrot.slane %v228, 4
  %v242 = vsel %vm149, %v241, %v216
  %v243 = vrot.slane %v216, 4
  %v244 = vsel %vm149, %v228, %v243
  %v246 = vunpack.c.l.s4 1934713408
  %v247 = vunpack.c.0.s8 %v246
  %v248 = vperm.slane %v242, %v247
  %v250 = vunpack.c.l.s4 1934713408
  %v251 = vunpack.c.0.s8 %v250
  %v252 = vperm.slane %v244, %v251
  %v253 = vrot.slane %v236, 4
  %v254 = vsel %vm149, 0.0, %v253
  %v255 = vrot.slane %v240, 4
  %v256 = vsel %vm149, 0.0, %v255
  %v257 = vrot.slane %v248, 4
  %v258 = vsel %vm149, 0.0, %v257
  %v259 = vrot.slane %v252, 4
  %v260 = vsel %vm149, 0.0, %v259
  %v261 = vsel %vm149, %v199, %v180
  %v263 = vunpack.c.l.s4 1983009808
  %v264 = vunpack.c.0.s8 %v263
  %v265 = vperm.slane %v261, %v264
  %v266 = vrot.slane %v200, 4
  %v267 = vsel %vm149, %v266, %v198
  %v269 = vunpack.c.l.s4 1983009808
  %v270 = vunpack.c.0.s8 %v269
  %v271 = vperm.slane %v267, %v270
  %v272 = vsel %vm149, %v203, %v192
  %v274 = vunpack.c.l.s4 1983009808
  %v275 = vunpack.c.0.s8 %v274
  %v276 = vperm.slane %v272, %v275
  %v277 = vrot.slane %v204, 4
  %v278 = vsel %vm149, %v277, %v202
  %v280 = vunpack.c.l.s4 1983009808
  %v281 = vunpack.c.0.s8 %v280
  %v282 = vperm.slane %v278, %v281
  %v283 = vrot.slane %v271, 4
  %v284 = vsel %vm149, %v283, %v265
  %v285 = vrot.slane %v265, 4
  %v286 = vsel %vm149, %v271, %v285
  %v288 = vunpack.c.l.s4 1934713408
  %v289 = vunpack.c.0.s8 %v288
  %v290 = vperm.slane %v284, %v289
  %v292 = vunpack.c.l.s4 1934713408
  %v293 = vunpack.c.0.s8 %v292
  %v294 = vperm.slane %v286, %v293
  %v295 = vrot.slane %v282, 4
  %v296 = vsel %vm149, %v295, %v276
  %v297 = vrot.slane %v276, 4
  %v298 = vsel %vm149, %v282, %v297
  %v300 = vunpack.c.l.s4 1934713408
  %v301 = vunpack.c.0.s8 %v300
  %v302 = vperm.slane %v296, %v301
  %v304 = vunpack.c.l.s4 1934713408
  %v305 = vunpack.c.0.s8 %v304
  %v306 = vperm.slane %v298, %v305
  %v307 = vrot.slane %v302, 4
  %v308 = vsel %vm149, %v307, %v290
  %v309 = vrot.slane %v290, 4
  %v310 = vsel %vm149, %v302, %v309
  %v311 = vrot.slane %v306, 4
  %v312 = vsel %vm149, %v311, %v294
  %v313 = vrot.slane %v294, 4
  %v314 = vsel %vm149, %v306, %v313
  %v315 = vsel %vm149, %v255, %v236
  %v317 = vunpack.c.l.s4 1983009808
  %v318 = vunpack.c.0.s8 %v317
  %v319 = vperm.slane %v315, %v318
  %v320 = vrot.slane %v256, 4
  %v321 = vsel %vm149, %v320, %v254
  %v323 = vunpack.c.l.s4 1983009808
  %v324 = vunpack.c.0.s8 %v323
  %v325 = vperm.slane %v321, %v324
  %v326 = vsel %vm149, %v259, %v248
  %v328 = vunpack.c.l.s4 1983009808
  %v329 = vunpack.c.0.s8 %v328
  %v330 = vperm.slane %v326, %v329
  %v331 = vrot.slane %v260, 4
  %v332 = vsel %vm149, %v331, %v258
  %v334 = vunpack.c.l.s4 1983009808
  %v335 = vunpack.c.0.s8 %v334
  %v336 = vperm.slane %v332, %v335
  %v337 = vrot.slane %v325, 4
  %v338 = vsel %vm149, %v337, %v319
  %v339 = vrot.slane %v319, 4
  %v340 = vsel %vm149, %v325, %v339
  %v342 = vunpack.c.l.s4 1934713408
  %v343 = vunpack.c.0.s8 %v342
  %v344 = vperm.slane %v338, %v343
  %v346 = vunpack.c.l.s4 1934713408
  %v347 = vunpack.c.0.s8 %v346
  %v348 = vperm.slane %v340, %v347
  %v349 = vrot.slane %v336, 4
  %v350 = vsel %vm149, %v349, %v330
  %v351 = vrot.slane %v330, 4
  %v352 = vsel %vm149, %v336, %v351
  %v354 = vunpack.c.l.s4 1934713408
  %v355 = vunpack.c.0.s8 %v354
  %v356 = vperm.slane %v350, %v355
  %v358 = vunpack.c.l.s4 1934713408
  %v359 = vunpack.c.0.s8 %v358
  %v360 = vperm.slane %v352, %v359
  %v361 = vrot.slane %v356, 4
  %v362 = vsel %vm149, %v361, %v344
  %v363 = vrot.slane %v344, 4
  %v364 = vsel %vm149, %v356, %v363
  %v365 = vrot.slane %v360, 4
  %v366 = vsel %vm149, %v365, %v348
  %v367 = vrot.slane %v348, 4
  %v368 = vsel %vm149, %v360, %v367
  %371 = vrot.lane.b32.xlu0 %v310, 8
  %v372 = vpop.permute.xlu0 %371
  %373 = vrot.lane.b32.xlu0 %v364, 8
  %v374 = vpop.permute.xlu0 %373
  %379 = vrot.lane.b32.xlu0 %v312, 16
  %v380 = vpop.permute.xlu0 %379
  %381 = vrot.lane.b32.xlu0 %v366, 16
  %v382 = vpop.permute.xlu0 %381
  %387 = vrot.lane.b32.xlu0 %v314, 24
  %v388 = vpop.permute.xlu0 %387
  %389 = vrot.lane.b32.xlu0 %v368, 24
  %v390 = vpop.permute.xlu0 %389
  %vm393 = vcmask 64512
  %v394 = vsel %vm393, %v308, %v372
  %v395 = vsel %vm393, %v362, %v374
  %vm396 = vcmask 130048
  %v397 = vsel %vm396, %v394, %v380
  %v398 = vsel %vm396, %v395, %v382
  %vm399 = vcmask 195584
  %v400 = vsel %vm399, %v397, %v388
  %v401 = vsel %vm399, %v398, %v390
  %v402 = vpack.c.bf16 %v400, %v400
  %v403 = vpack.c.bf16 %v401, %v401
  %vm404 = vcmask 257024
  %405 = vst.msk [vmem:[%s5] sm:$0xf] %vm404, %v402
  %406 = vst.msk [vmem:[%s5 + $0x4] sm:$0xf] %vm404, %v403
  %423 = vrot.lane.b32.xlu0 %v180, 120
  %v424 = vpop.permute.xlu0 %423
  %425 = vrot.lane.b32.xlu0 %v198, 120
  %v426 = vpop.permute.xlu0 %425
  %427 = vrot.lane.b32.xlu0 %v184, 120
  %v428 = vpop.permute.xlu0 %427
  %429 = vrot.lane.b32.xlu0 %v200, 120
  %v430 = vpop.permute.xlu0 %429
  %431 = vrot.lane.b32.xlu0 %v192, 120
  %v432 = vpop.permute.xlu0 %431
  %433 = vrot.lane.b32.xlu0 %v202, 120
  %v434 = vpop.permute.xlu0 %433
  %435 = vrot.lane.b32.xlu0 %v196, 120
  %v436 = vpop.permute.xlu0 %435
  %437 = vrot.lane.b32.xlu0 %v204, 120
  %v438 = vpop.permute.xlu0 %437
  %439 = vrot.lane.b32.xlu0 %v236, 120
  %v440 = vpop.permute.xlu0 %439
  %441 = vrot.lane.b32.xlu0 %v254, 120
  %v442 = vpop.permute.xlu0 %441
  %443 = vrot.lane.b32.xlu0 %v240, 120
  %v444 = vpop.permute.xlu0 %443
  %445 = vrot.lane.b32.xlu0 %v256, 120
  %v446 = vpop.permute.xlu0 %445
  %447 = vrot.lane.b32.xlu0 %v248, 120
  %v448 = vpop.permute.xlu0 %447
  %449 = vrot.lane.b32.xlu0 %v258, 120
  %v450 = vpop.permute.xlu0 %449
  %451 = vrot.lane.b32.xlu0 %v252, 120
  %v452 = vpop.permute.xlu0 %451
  %453 = vrot.lane.b32.xlu0 %v260, 120
  %v454 = vpop.permute.xlu0 %453
  %v471 = vrot.slane %v428, 4
  %v472 = vsel %vm149, %v471, %v424
  %v474 = vunpack.c.l.s4 1983009808
  %v475 = vunpack.c.0.s8 %v474
  %v476 = vperm.slane %v472, %v475
  %v477 = vrot.slane %v430, 4
  %v478 = vsel %vm149, %v477, %v426
  %v480 = vunpack.c.l.s4 1983009808
  %v481 = vunpack.c.0.s8 %v480
  %v482 = vperm.slane %v478, %v481
  %v483 = vrot.slane %v436, 4
  %v484 = vsel %vm149, %v483, %v432
  %v486 = vunpack.c.l.s4 1983009808
  %v487 = vunpack.c.0.s8 %v486
  %v488 = vperm.slane %v484, %v487
  %v489 = vrot.slane %v438, 4
  %v490 = vsel %vm149, %v489, %v434
  %v492 = vunpack.c.l.s4 1983009808
  %v493 = vunpack.c.0.s8 %v492
  %v494 = vperm.slane %v490, %v493
  %v495 = vrot.slane %v482, 4
  %v496 = vsel %vm149, %v495, %v476
  %v497 = vrot.slane %v476, 4
  %v498 = vsel %vm149, %v482, %v497
  %v500 = vunpack.c.l.s4 1934713408
  %v501 = vunpack.c.0.s8 %v500
  %v502 = vperm.slane %v496, %v501
  %v504 = vunpack.c.l.s4 1934713408
  %v505 = vunpack.c.0.s8 %v504
  %v506 = vperm.slane %v498, %v505
  %v507 = vrot.slane %v494, 4
  %v508 = vsel %vm149, %v507, %v488
  %v509 = vrot.slane %v488, 4
  %v510 = vsel %vm149, %v494, %v509
  %v512 = vunpack.c.l.s4 1934713408
  %v513 = vunpack.c.0.s8 %v512
  %v514 = vperm.slane %v508, %v513
  %v516 = vunpack.c.l.s4 1934713408
  %v517 = vunpack.c.0.s8 %v516
  %v518 = vperm.slane %v510, %v517
  %v519 = vrot.slane %v514, 4
  %v520 = vsel %vm149, %v519, %v502
  %v521 = vrot.slane %v502, 4
  %v522 = vsel %vm149, %v514, %v521
  %v523 = vrot.slane %v518, 4
  %v524 = vsel %vm149, %v523, %v506
  %v525 = vrot.slane %v506, 4
  %v526 = vsel %vm149, %v518, %v525
  %v527 = vrot.slane %v444, 4
  %v528 = vsel %vm149, %v527, %v440
  %v530 = vunpack.c.l.s4 1983009808
  %v531 = vunpack.c.0.s8 %v530
  %v532 = vperm.slane %v528, %v531
  %v533 = vrot.slane %v446, 4
  %v534 = vsel %vm149, %v533, %v442
  %v536 = vunpack.c.l.s4 1983009808
  %v537 = vunpack.c.0.s8 %v536
  %v538 = vperm.slane %v534, %v537
  %v539 = vrot.slane %v452, 4
  %v540 = vsel %vm149, %v539, %v448
  %v542 = vunpack.c.l.s4 1983009808
  %v543 = vunpack.c.0.s8 %v542
  %v544 = vperm.slane %v540, %v543
  %v545 = vrot.slane %v454, 4
  %v546 = vsel %vm149, %v545, %v450
  %v548 = vunpack.c.l.s4 1983009808
  %v549 = vunpack.c.0.s8 %v548
  %v550 = vperm.slane %v546, %v549
  %v551 = vrot.slane %v538, 4
  %v552 = vsel %vm149, %v551, %v532
  %v553 = vrot.slane %v532, 4
  %v554 = vsel %vm149, %v538, %v553
  %v556 = vunpack.c.l.s4 1934713408
  %v557 = vunpack.c.0.s8 %v556
  %v558 = vperm.slane %v552, %v557
  %v560 = vunpack.c.l.s4 1934713408
  %v561 = vunpack.c.0.s8 %v560
  %v562 = vperm.slane %v554, %v561
  %v563 = vrot.slane %v550, 4
  %v564 = vsel %vm149, %v563, %v544
  %v565 = vrot.slane %v544, 4
  %v566 = vsel %vm149, %v550, %v565
  %v568 = vunpack.c.l.s4 1934713408
  %v569 = vunpack.c.0.s8 %v568
  %v570 = vperm.slane %v564, %v569
  %v572 = vunpack.c.l.s4 1934713408
  %v573 = vunpack.c.0.s8 %v572
  %v574 = vperm.slane %v566, %v573
  %v575 = vrot.slane %v570, 4
  %v576 = vsel %vm149, %v575, %v558
  %v577 = vrot.slane %v558, 4
  %v578 = vsel %vm149, %v570, %v577
  %v579 = vrot.slane %v574, 4
  %v580 = vsel %vm149, %v579, %v562
  %v581 = vrot.slane %v562, 4
  %v582 = vsel %vm149, %v574, %v581
  %585 = vrot.lane.b32.xlu0 %v522, 8
  %v586 = vpop.permute.xlu0 %585
  %587 = vrot.lane.b32.xlu0 %v578, 8
  %v588 = vpop.permute.xlu0 %587
  %593 = vrot.lane.b32.xlu0 %v524, 16
  %v594 = vpop.permute.xlu0 %593
  %595 = vrot.lane.b32.xlu0 %v580, 16
  %v596 = vpop.permute.xlu0 %595
  %601 = vrot.lane.b32.xlu0 %v526, 24
  %v602 = vpop.permute.xlu0 %601
  %603 = vrot.lane.b32.xlu0 %v582, 24
  %v604 = vpop.permute.xlu0 %603
  %v607 = vsel %vm393, %v520, %v586
  %v608 = vsel %vm393, %v576, %v588
  %v609 = vsel %vm396, %v607, %v594
  %v610 = vsel %vm396, %v608, %v596
  %v611 = vsel %vm399, %v609, %v602
  %v612 = vsel %vm399, %v610, %v604
  %v613 = vpack.c.bf16 %v611, %v611
  %v614 = vpack.c.bf16 %v612, %v612
  %615 = vst.msk [vmem:[%s6] sm:$0xf] %vm404, %v613
  %616 = vst.msk [vmem:[%s6 + $0x4] sm:$0xf] %vm404, %v614
  %617 = vrot.lane.b32.xlu0 %v180, 112
  %v618 = vpop.permute.xlu0 %617
  %619 = vrot.lane.b32.xlu0 %v198, 112
  %v620 = vpop.permute.xlu0 %619
  %621 = vrot.lane.b32.xlu0 %v184, 112
  %v622 = vpop.permute.xlu0 %621
  %623 = vrot.lane.b32.xlu0 %v200, 112
  %v624 = vpop.permute.xlu0 %623
  %625 = vrot.lane.b32.xlu0 %v192, 112
  %v626 = vpop.permute.xlu0 %625
  %627 = vrot.lane.b32.xlu0 %v202, 112
  %v628 = vpop.permute.xlu0 %627
  %629 = vrot.lane.b32.xlu0 %v196, 112
  %v630 = vpop.permute.xlu0 %629
  %631 = vrot.lane.b32.xlu0 %v204, 112
  %v632 = vpop.permute.xlu0 %631
  %633 = vrot.lane.b32.xlu0 %v236, 112
  %v634 = vpop.permute.xlu0 %633
  %635 = vrot.lane.b32.xlu0 %v254, 112
  %v636 = vpop.permute.xlu0 %635
  %637 = vrot.lane.b32.xlu0 %v240, 112
  %v638 = vpop.permute.xlu0 %637
  %639 = vrot.lane.b32.xlu0 %v256, 112
  %v640 = vpop.permute.xlu0 %639
  %641 = vrot.lane.b32.xlu0 %v248, 112
  %v642 = vpop.permute.xlu0 %641
  %643 = vrot.lane.b32.xlu0 %v258, 112
  %v644 = vpop.permute.xlu0 %643
  %645 = vrot.lane.b32.xlu0 %v252, 112
  %v646 = vpop.permute.xlu0 %645
  %647 = vrot.lane.b32.xlu0 %v260, 112
  %v648 = vpop.permute.xlu0 %647
  %v665 = vrot.slane %v622, 4
  %v666 = vsel %vm149, %v665, %v618
  %v668 = vunpack.c.l.s4 1983009808
  %v669 = vunpack.c.0.s8 %v668
  %v670 = vperm.slane %v666, %v669
  %v671 = vrot.slane %v624, 4
  %v672 = vsel %vm149, %v671, %v620
  %v674 = vunpack.c.l.s4 1983009808
  %v675 = vunpack.c.0.s8 %v674
  %v676 = vperm.slane %v672, %v675
  %v677 = vrot.slane %v630, 4
  %v678 = vsel %vm149, %v677, %v626
  %v680 = vunpack.c.l.s4 1983009808
  %v681 = vunpack.c.0.s8 %v680
  %v682 = vperm.slane %v678, %v681
  %v683 = vrot.slane %v632, 4
  %v684 = vsel %vm149, %v683, %v628
  %v686 = vunpack.c.l.s4 1983009808
  %v687 = vunpack.c.0.s8 %v686
  %v688 = vperm.slane %v684, %v687
  %v689 = vrot.slane %v676, 4
  %v690 = vsel %vm149, %v689, %v670
  %v691 = vrot.slane %v670, 4
  %v692 = vsel %vm149, %v676, %v691
  %v694 = vunpack.c.l.s4 1934713408
  %v695 = vunpack.c.0.s8 %v694
  %v696 = vperm.slane %v690, %v695
  %v698 = vunpack.c.l.s4 1934713408
  %v699 = vunpack.c.0.s8 %v698
  %v700 = vperm.slane %v692, %v699
  %v701 = vrot.slane %v688, 4
  %v702 = vsel %vm149, %v701, %v682
  %v703 = vrot.slane %v682, 4
  %v704 = vsel %vm149, %v688, %v703
  %v706 = vunpack.c.l.s4 1934713408
  %v707 = vunpack.c.0.s8 %v706
  %v708 = vperm.slane %v702, %v707
  %v710 = vunpack.c.l.s4 1934713408
  %v711 = vunpack.c.0.s8 %v710
  %v712 = vperm.slane %v704, %v711
  %v713 = vrot.slane %v708, 4
  %v714 = vsel %vm149, %v713, %v696
  %v715 = vrot.slane %v696, 4
  %v716 = vsel %vm149, %v708, %v715
  %v717 = vrot.slane %v712, 4
  %v718 = vsel %vm149, %v717, %v700
  %v719 = vrot.slane %v700, 4
  %v720 = vsel %vm149, %v712, %v719
  %v721 = vrot.slane %v638, 4
  %v722 = vsel %vm149, %v721, %v634
  %v724 = vunpack.c.l.s4 1983009808
  %v725 = vunpack.c.0.s8 %v724
  %v726 = vperm.slane %v722, %v725
  %v727 = vrot.slane %v640, 4
  %v728 = vsel %vm149, %v727, %v636
  %v730 = vunpack.c.l.s4 1983009808
  %v731 = vunpack.c.0.s8 %v730
  %v732 = vperm.slane %v728, %v731
  %v733 = vrot.slane %v646, 4
  %v734 = vsel %vm149, %v733, %v642
  %v736 = vunpack.c.l.s4 1983009808
  %v737 = vunpack.c.0.s8 %v736
  %v738 = vperm.slane %v734, %v737
  %v739 = vrot.slane %v648, 4
  %v740 = vsel %vm149, %v739, %v644
  %v742 = vunpack.c.l.s4 1983009808
  %v743 = vunpack.c.0.s8 %v742
  %v744 = vperm.slane %v740, %v743
  %v745 = vrot.slane %v732, 4
  %v746 = vsel %vm149, %v745, %v726
  %v747 = vrot.slane %v726, 4
  %v748 = vsel %vm149, %v732, %v747
  %v750 = vunpack.c.l.s4 1934713408
  %v751 = vunpack.c.0.s8 %v750
  %v752 = vperm.slane %v746, %v751
  %v754 = vunpack.c.l.s4 1934713408
  %v755 = vunpack.c.0.s8 %v754
  %v756 = vperm.slane %v748, %v755
  %v757 = vrot.slane %v744, 4
  %v758 = vsel %vm149, %v757, %v738
  %v759 = vrot.slane %v738, 4
  %v760 = vsel %vm149, %v744, %v759
  %v762 = vunpack.c.l.s4 1934713408
  %v763 = vunpack.c.0.s8 %v762
  %v764 = vperm.slane %v758, %v763
  %v766 = vunpack.c.l.s4 1934713408
  %v767 = vunpack.c.0.s8 %v766
  %v768 = vperm.slane %v760, %v767
  %v769 = vrot.slane %v764, 4
  %v770 = vsel %vm149, %v769, %v752
  %v771 = vrot.slane %v752, 4
  %v772 = vsel %vm149, %v764, %v771
  %v773 = vrot.slane %v768, 4
  %v774 = vsel %vm149, %v773, %v756
  %v775 = vrot.slane %v756, 4
  %v776 = vsel %vm149, %v768, %v775
  %779 = vrot.lane.b32.xlu0 %v716, 8
  %v780 = vpop.permute.xlu0 %779
  %781 = vrot.lane.b32.xlu0 %v772, 8
  %v782 = vpop.permute.xlu0 %781
  %787 = vrot.lane.b32.xlu0 %v718, 16
  %v788 = vpop.permute.xlu0 %787
  %789 = vrot.lane.b32.xlu0 %v774, 16
  %v790 = vpop.permute.xlu0 %789
  %795 = vrot.lane.b32.xlu0 %v720, 24
  %v796 = vpop.permute.xlu0 %795
  %797 = vrot.lane.b32.xlu0 %v776, 24
  %v798 = vpop.permute.xlu0 %797
  %v801 = vsel %vm393, %v714, %v780
  %v802 = vsel %vm393, %v770, %v782
  %v803 = vsel %vm396, %v801, %v788
  %v804 = vsel %vm396, %v802, %v790
  %v805 = vsel %vm399, %v803, %v796
  %v806 = vsel %vm399, %v804, %v798
  %v807 = vpack.c.bf16 %v805, %v805
  %v808 = vpack.c.bf16 %v806, %v806
  %809 = vst.msk [vmem:[%s7] sm:$0xf] %vm404, %v807
  %810 = vst.msk [vmem:[%s7 + $0x4] sm:$0xf] %vm404, %v808
  // Predicated region
  $region22: #{transformer_layer.3} parent=0 // pred_check
    _
  $region23: #{transformer_layer.3} parent=0 // pred_check_branch
    %812 = sbr.rel (0) target = $region25
  $region24: #{transformer_layer.3} parent=0 // pred_region
    _
  $region25: #{transformer_layer.3} parent=0 // pred_fallthru
    _
  // Predicated region
  $region26: #{transformer_layer.3} parent=0 // pred_check
    _
  $region27: #{transformer_layer.3} parent=0 // pred_check_branch
    %814 = sbr.rel (0) target = $region29
  $region28: #{transformer_layer.3} parent=0 // pred_region
    _
  $region29: #{transformer_layer.3} parent=0 // pred_fallthru
    _
  // Predicated region
  $region30: #{transformer_layer.3} parent=0 // pred_check
    _
  $region31: #{transformer_layer.3} parent=0 // pred_check_branch
    %816 = sbr.rel (0) target = $region33
  $region32: #{transformer_layer.3} parent=0 // pred_region
    _
  $region33: #{transformer_layer.3} parent=0 // pred_fallthru
    _
  // Predicated region
  $region34: #{transformer_layer.3} parent=0 // pred_check
    _
  $region35: #{transformer_layer.3} parent=0 // pred_check_branch
    %818 = sbr.rel (0) target = $region37
  $region36: #{transformer_layer.3} parent=0 // pred_region
    _
  $region37: #{transformer_layer.3} parent=0 // pred_fallthru
    _
  // Predicated region
  $region38: #{transformer_layer.3} parent=0 // pred_check
    _
  $region39: #{transformer_layer.3} parent=0 // pred_check_branch
    %820 = sbr.rel (0) target = $region41
  $region40: #{transformer_layer.3} parent=0 // pred_region
    _
  $region41: #{transformer_layer.3} parent=0 // pred_fallthru
    _
  // Predicated region
  $region42: #{transformer_layer.3} parent=0 // pred_check
    _
  $region43: #{transformer_layer.3} parent=0 // pred_check_branch
    %822 = sbr.rel (0) target = $region45
  $region44: #{transformer_layer.3} parent=0 // pred_region
    _
  $region45: #{transformer_layer.3} parent=0 // pred_fallthru
    _

// kernel: transformer_layer.5
$region0: #{transformer_layer.5}
  #allocation0 [shape = 'u32[]', space=smem, size = 0x4, offset = 0x4, fixed_abs, tag = 'smem constant byte address 0x4 - core index']
  #allocation1 [shape = 'u32[72,128]{1,0:T(1,128)}', space=vmem, size = 0x9000, scoped, tag = 'internal scratch']
  %s0 = inlined_call_operand.vmem [shape: bf16[16,32], index: 0, kind: input, shape index: {}]
  %s1 = inlined_call_operand.vmem [shape: f32[16,32], index: 1, kind: input, shape index: {}]
  %s2 = inlined_call_operand.vmem [shape: bf16[32,32], index: 2, kind: input, shape index: {}]
  %s3 = inlined_call_operand.vmem [shape: f32[1,32], index: 3, kind: input, shape index: {}]
  %s4 = inlined_call_operand.vmem [shape: f32[1,32], index: 4, kind: input, shape index: {}]
  %s5 = inlined_call_operand.vmem [shape: f32[1,32], index: 5, kind: input, shape index: {}]
  %s6 = inlined_call_operand.vmem [shape: bf16[32,64], index: 6, kind: input, shape index: {}]
  %s7 = inlined_call_operand.vmem [shape: f32[1,64], index: 7, kind: input, shape index: {}]
  %s8 = inlined_call_operand.vmem [shape: bf16[64,32], index: 8, kind: input, shape index: {}]
  %s9 = inlined_call_operand.vmem [shape: f32[1,32], index: 9, kind: input, shape index: {}]
  %s10 = inlined_call_operand.vmem [shape: f32[16,32], index: 10, kind: output, shape index: {}]
  %s11 = sld [smem:[#allocation0]]
  $region50: #{transformer_layer.5} parent=0
    _
  %s13 = ssub.s32 1, %s11
  %s14 = scalar_select 0, %s13, %s11
  // Predicated region
  $region2: #{transformer_layer.5} parent=0 // pred_check
    _
  $region3: #{transformer_layer.5} parent=0 // pred_check_branch
    %16 = sbr.rel (0) target = $region5
  $region4: #{transformer_layer.5} parent=0 // pred_region
    _
  $region5: #{transformer_layer.5} parent=0 // pred_fallthru
    _
  // Predicated region
  $region6: #{transformer_layer.5} parent=0 // pred_check
    _
  $region7: #{transformer_layer.5} parent=0 // pred_check_branch
    %18 = sbr.rel (0) target = $region9
  $region8: #{transformer_layer.5} parent=0 // pred_region
    _
  $region9: #{transformer_layer.5} parent=0 // pred_fallthru
    _
  // Predicated region
  $region10: #{transformer_layer.5} parent=0 // pred_check
    _
  $region11: #{transformer_layer.5} parent=0 // pred_check_branch
    %20 = sbr.rel (0) target = $region13
  $region12: #{transformer_layer.5} parent=0 // pred_region
    _
  $region13: #{transformer_layer.5} parent=0 // pred_fallthru
    _
  // Predicated region
  $region14: #{transformer_layer.5} parent=0 // pred_check
    _
  $region15: #{transformer_layer.5} parent=0 // pred_check_branch
    %22 = sbr.rel (0) target = $region17
  $region16: #{transformer_layer.5} parent=0 // pred_region
    _
  $region17: #{transformer_layer.5} parent=0 // pred_fallthru
    _
  // Predicated region
  $region18: #{transformer_layer.5} parent=0 // pred_check
    _
  $region19: #{transformer_layer.5} parent=0 // pred_check_branch
    %24 = sbr.rel (0) target = $region21
  $region20: #{transformer_layer.5} parent=0 // pred_region
    _
  $region21: #{transformer_layer.5} parent=0 // pred_fallthru
    _
  // Predicated region
  $region22: #{transformer_layer.5} parent=0 // pred_check
    _
  $region23: #{transformer_layer.5} parent=0 // pred_check_branch
    %26 = sbr.rel (0) target = $region25
  $region24: #{transformer_layer.5} parent=0 // pred_region
    _
  $region25: #{transformer_layer.5} parent=0 // pred_fallthru
    _
  // Predicated region
  $region26: #{transformer_layer.5} parent=0 // pred_check
    _
  $region27: #{transformer_layer.5} parent=0 // pred_check_branch
    %28 = sbr.rel (0) target = $region29
  $region28: #{transformer_layer.5} parent=0 // pred_region
    _
  $region29: #{transformer_layer.5} parent=0 // pred_fallthru
    _
  // Predicated region
  $region30: #{transformer_layer.5} parent=0 // pred_check
    _
  $region31: #{transformer_layer.5} parent=0 // pred_check_branch
    %30 = sbr.rel (0) target = $region33
  $region32: #{transformer_layer.5} parent=0 // pred_region
    _
  $region33: #{transformer_layer.5} parent=0 // pred_fallthru
    _
  // Predicated region
  $region34: #{transformer_layer.5} parent=0 // pred_check
    _
  $region35: #{transformer_layer.5} parent=0 // pred_check_branch
    %32 = sbr.rel (0) target = $region37
  $region36: #{transformer_layer.5} parent=0 // pred_region
    _
  $region37: #{transformer_layer.5} parent=0 // pred_fallthru
    _
  // Predicated region
  $region38: #{transformer_layer.5} parent=0 // pred_check
    _
  $region39: #{transformer_layer.5} parent=0 // pred_check_branch
    %34 = sbr.rel (0) target = $region41
  $region40: #{transformer_layer.5} parent=0 // pred_region
    _
  $region41: #{transformer_layer.5} parent=0 // pred_fallthru
    _
  %v36 = vld [vmem:[%s0] sm:$0xf]
  %v37 = vld [vmem:[%s0 + $0x4] sm:$0xf]
  %v38 = vld [vmem:[%s2] sm:$0xf]
  %v39 = vld [vmem:[%s2 + $0x4] sm:$0xf]
  %v40 = vld [vmem:[%s2 + $0x8] sm:$0xf]
  %v41 = vld [vmem:[%s2 + $0xc] sm:$0xf]
  %v42 = vld [vmem:[%s3] sm:$0x1]
  %v44 = vperm.slane %v42, 0
  %v48 = vunpack.c.l.b16 %v36
  %v49 = vunpack.c.l.b16 %v37
  %v50 = vpack.c.b16 %v49, %v48
  %v55 = vunpack.c.l.b16 %v38
  %v56 = vunpack.c.l.b16 %v39
  %v57 = vunpack.c.l.b16 %v40
  %v58 = vunpack.c.l.b16 %v41
  %v59 = vpack.c.b16 %v56, %v55
  %v60 = vpack.c.b16 %v58, %v57
  %vm63 = vcmask 261120
  %v65 = vsel %vm63, %v50, 0
  %67 = vmatpush.bf16.msra.mxu0 0
  %68 = vmatpush.bf16.msra.mxu0 0
  %69 = vmatpush.bf16.msra.mxu0 0
  %70 = vmatpush.bf16.msra.mxu0 0
  %71 = vmatpush.bf16.msra.mxu0 0
  %72 = vmatpush.bf16.msra.mxu0 0
  %73 = vmatpush.bf16.msra.mxu0 %v60
  %74 = vmatpush.bf16.msra.mxu0 %v59
  %75 = vmatmul.bf16.gmra.mxu0 %v65
  %v76 = vpop.f32.mrf.mxu0
  %v77 = vadd.f32 %v44, %v76
  %v78 = vpop.f32.mrf.mxu0
  %v79 = vadd.f32 %v44, %v78
  %80 = vdwg.mxu0
  %v81 = vld [vmem:[%s1] sm:$0xff]
  %v82 = vld [vmem:[%s1 + $0x8] sm:$0xff]
  %v83 = vadd.f32 %v77, %v81
  %v84 = vadd.f32 %v79, %v82
  %v85 = vsel %vm63, %v83, 0.0
  %86 = vadd.xlane.f32.xlu0 %v85
  %v87 = vpop.xlane.xlu0 %86
  %v88 = vsel %vm63, %v84, 0.0
  %89 = vadd.xlane.f32.xlu0 %v88
  %v90 = vpop.xlane.xlu0 %89
  %v91 = vrcp.pop 32.0
  %v92 = vmul.f32 32.0, %v91
  %v93 = vsub.f32 1.0, %v92
  %v94 = vmul.f32 %v91, %v93
  %v95 = vadd.f32 %v91, %v94
  %vm96 = vweird.f32 %v91
  %v97 = vsel %vm96, %v91, %v95
  %v98 = vmul.f32 %v87, %v97
  %v99 = vmul.f32 %v90, %v97
  %v100 = vsub.f32 %v83, %v98
  %v101 = vsub.f32 %v84, %v99
  %v102 = vmul.f32 %v100, %v100
  %v103 = vmul.f32 %v101, %v101
  %v104 = vsel %vm63, %v102, 0.0
  %105 = vadd.xlane.f32.xlu0 %v104
  %v106 = vpop.xlane.xlu0 %105
  %v107 = vsel %vm63, %v103, 0.0
  %108 = vadd.xlane.f32.xlu0 %v107
  %v109 = vpop.xlane.xlu0 %108
  %v110 = vmul.f32 %v106, %v97
  %v111 = vmul.f32 %v109, %v97
  %v112 = vadd.f32 %v110, 1e-05
  %v113 = vadd.f32 %v111, 1e-05
  %v114 = vrsqrt.pop %v112
  %v115 = vmul.f32 %v114, %v112
  %v116 = vmul.f32 %v115, %v114
  %v117 = vmul.f32 0.5, %v116
  %v118 = vsub.f32 1.5, %v117
  %v119 = vmul.f32 %v114, %v118
  %vm120 = vweird.f32 %v112
  %vm121 = vweird.f32 %v114
  %vm122 = vmor %vm120, %vm121
  %v123 = vsel %vm122, %v114, %v119
  %v124 = vrsqrt.pop %v113
  %v125 = vmul.f32 %v124, %v113
  %v126 = vmul.f32 %v125, %v124
  %v127 = vmul.f32 0.5, %v126
  %v128 = vsub.f32 1.5, %v127
  %v129 = vmul.f32 %v124, %v128
  %vm130 = vweird.f32 %v113
  %vm131 = vweird.f32 %v124
  %vm132 = vmor %vm130, %vm131
  %v133 = vsel %vm132, %v124, %v129
  %v134 = vmul.f32 %v100, %v123
  %v135 = vmul.f32 %v101, %v133
  %v136 = vld [vmem:[%s4] sm:$0x1]
  %v138 = vperm.slane %v136, 0
  %v140 = vmul.f32 %v134, %v138
  %v141 = vmul.f32 %v135, %v138
  %v142 = vld [vmem:[%s5] sm:$0x1]
  %v144 = vperm.slane %v142, 0
  %v146 = vadd.f32 %v140, %v144
  %v147 = vadd.f32 %v141, %v144
  %v148 = vpack.c.bf16 %v147, %v146
  %v149 = vld [vmem:[%s6] sm:$0xf]
  %v150 = vld [vmem:[%s6 + $0x4] sm:$0xf]
  %v151 = vld [vmem:[%s6 + $0x8] sm:$0xf]
  %v152 = vld [vmem:[%s6 + $0xc] sm:$0xf]
  %v153 = vld [vmem:[%s7] sm:$0x1]
  %v155 = vperm.slane %v153, 0
  %v161 = vunpack.c.l.b16 %v149
  %v162 = vunpack.c.l.b16 %v150
  %v163 = vunpack.c.l.b16 %v151
  %v164 = vunpack.c.l.b16 %v152
  %v165 = vpack.c.b16 %v162, %v161
  %v166 = vpack.c.b16 %v164, %v163
  %v170 = vsel %vm63, %v148, 0
  %172 = vmatpush.bf16.msra.mxu0 0
  %173 = vmatpush.bf16.msra.mxu0 0
  %174 = vmatpush.bf16.msra.mxu0 0
  %175 = vmatpush.bf16.msra.mxu0 0
  %176 = vmatpush.bf16.msra.mxu0 0
  %177 = vmatpush.bf16.msra.mxu0 0
  %178 = vmatpush.bf16.msra.mxu0 %v166
  %179 = vmatpush.bf16.msra.mxu0 %v165
  %180 = vmatmul.bf16.gmra.mxu0 %v170
  %v181 = vpop.f32.mrf.mxu0
  %v182 = vadd.f32 %v155, %v181
  %v183 = vpop.f32.mrf.mxu0
  %v184 = vadd.f32 %v155, %v183
  %185 = vdwg.mxu0
  %v186 = vmul.f32 %v182, %v182
  %v187 = vmul.f32 %v184, %v184
  %v188 = vmul.f32 %v182, %v186
  %v189 = vmul.f32 %v184, %v187
  %v190 = vmul.f32 %v188, 0.044715
  %v191 = vmul.f32 %v189, 0.044715
  %v192 = vadd.f32 %v182, %v190
  %v193 = vadd.f32 %v184, %v191
  %v194 = vmul.f32 %v192, 0.7978846
  %v195 = vmul.f32 %v193, 0.7978846
  %v196 = vtanh.pop %v194
  %v197 = vtanh.pop %v195
  %v198 = vadd.f32 %v196, 1.0
  %v199 = vadd.f32 %v197, 1.0
  %v200 = vmul.f32 %v198, 0.5
  %v201 = vmul.f32 %v199, 0.5
  %v202 = vmul.f32 %v182, %v200
  %v203 = vmul.f32 %v184, %v201
  %v204 = vpack.c.bf16 %v203, %v202
  %v205 = vld [vmem:[%s8] sm:$0xf]
  %v206 = vld [vmem:[%s8 + $0x4] sm:$0xf]
  %v207 = vld [vmem:[%s8 + $0x8] sm:$0xf]
  %v208 = vld [vmem:[%s8 + $0xc] sm:$0xf]
  %v209 = vld [vmem:[%s8 + $0x10] sm:$0xf]
  %v210 = vld [vmem:[%s8 + $0x14] sm:$0xf]
  %v211 = vld [vmem:[%s8 + $0x18] sm:$0xf]
  %v212 = vld [vmem:[%s8 + $0x1c] sm:$0xf]
  %v213 = vld [vmem:[%s9] sm:$0x1]
  %v215 = vperm.slane %v213, 0
  %v225 = vunpack.c.l.b16 %v205
  %v226 = vunpack.c.l.b16 %v206
  %v227 = vunpack.c.l.b16 %v207
  %v228 = vunpack.c.l.b16 %v208
  %v229 = vunpack.c.l.b16 %v209
  %v230 = vunpack.c.l.b16 %v210
  %v231 = vunpack.c.l.b16 %v211
  %v232 = vunpack.c.l.b16 %v212
  %v233 = vpack.c.b16 %v226, %v225
  %v234 = vpack.c.b16 %v228, %v227
  %v235 = vpack.c.b16 %v230, %v229
  %v236 = vpack.c.b16 %v232, %v231
  %vm241 = vcmask 523264
  %v243 = vsel %vm241, %v204, 0
  %245 = vmatpush.bf16.msra.mxu0 0
  %246 = vmatpush.bf16.msra.mxu0 0
  %247 = vmatpush.bf16.msra.mxu0 0
  %248 = vmatpush.bf16.msra.mxu0 0
  %249 = vmatpush.bf16.msra.mxu0 %v236
  %250 = vmatpush.bf16.msra.mxu0 %v235
  %251 = vmatpush.bf16.msra.mxu0 %v234
  %252 = vmatpush.bf16.msra.mxu0 %v233
  %253 = vmatmul.bf16.gmra.mxu0 %v243
  %v254 = vpop.f32.mrf.mxu0
  %v255 = vadd.f32 %v215, %v254
  %v256 = vpop.f32.mrf.mxu0
  %v257 = vadd.f32 %v215, %v256
  %258 = vdwg.mxu0
  %v259 = vadd.f32 %v255, %v83
  %v260 = vadd.f32 %v257, %v84
  %261 = vst.msk [vmem:[%s10] sm:$0xff] %vm63, %v259
  %262 = vst.msk [vmem:[%s10 + $0x8] sm:$0xff] %vm63, %v260
  // Predicated region
  $region42: #{transformer_layer.5} parent=0 // pred_check
    _
  $region43: #{transformer_layer.5} parent=0 // pred_check_branch
    %264 = sbr.rel (0) target = $region45
  $region44: #{transformer_layer.5} parent=0 // pred_region
    _
  $region45: #{transformer_layer.5} parent=0 // pred_fallthru
    _
  // Predicated region
  $region46: #{transformer_layer.5} parent=0 // pred_check
    _
  $region47: #{transformer_layer.5} parent=0 // pred_check_branch
    %266 = sbr.rel (0) target = $region49
  $region48: #{transformer_layer.5} parent=0 // pred_region
    _
  $region49: #{transformer_layer.5} parent=0 // pred_fallthru
    _

// kernel: transformer_layer.4
$region0: #{transformer_layer.4}
  #allocation0 [shape = 'u32[]', space=smem, size = 0x4, offset = 0x4, fixed_abs, tag = 'smem constant byte address 0x4 - core index']
  #allocation1 [shape = 'u32[72,128]{1,0:T(1,128)}', space=vmem, size = 0x9000, scoped, tag = 'internal scratch']
  #allocation2 [shape = 'f32[4,8,1]{2,1,0:T(8,128)}', space=vmem, size = 0x4000, scoped, tag = 'scratch operand']
  #allocation3 [shape = 'f32[4,8,1]{2,1,0:T(8,128)}', space=vmem, size = 0x4000, scoped, tag = 'scratch operand']
  #allocation4 [shape = 'f32[4,8,8]{2,1,0:T(8,128)}', space=vmem, size = 0x4000, scoped, tag = 'scratch operand']
  %s0 = inlined_call_operand.vmem [shape: bf16[2,8,32], index: 0, kind: input, shape index: {}]
  %s1 = inlined_call_operand.vmem [shape: bf16[2,8,32], index: 1, kind: input, shape index: {}]
  %s2 = inlined_call_operand.vmem [shape: bf16[2,8,32], index: 2, kind: input, shape index: {}]
  %s3 = inlined_call_operand.hbm [shape: s32[2,1,8,8], index: 3, kind: input, shape index: {}]
  %s4 = inlined_call_operand.vmem [shape: bf16[2,8,32], index: 4, kind: output, shape index: {}]
  %s5 = sld [smem:[#allocation0]]
  $region61: #{transformer_layer.4} parent=0
    _
  %s7 = ssub.s32 1, %s5
  %s8 = scalar_select 0, %s7, %s5
  $region1: #{transformer_layer.4} parent=0
    #allocation5 [shape = 'u8[8192]{0}', space=vmem, size = 0x2000, scoped, tag = 'input window, operand 3']
    #allocation6 [shape = 's32[2]{0}', space=sflag, size = 0x8, scoped, tag = 'scoped memory for transformer_layer.4']
    %9 = vsyncpa [#allocation6], 0
    %s10 = scalar_lea.sflag [#allocation6], 1
    %11 = vsyncpa %s10, 0
    loop: start=0, step=1, limit=4
    $region2: #{transformer_layer.4} parent=1 // loop_pre_header
      _
    $region3: #{transformer_layer.4} parent=1 // loop_header
      %s13 = sphi 0, %s17
      %p14 = scmp.ge.s32.totalorder %s13, 4
      %s20 = sphi 0, %s39
      %s21 = sphi 0, %s35
      %s22 = sphi 0, %s31
      %s23 = sphi 0, %s20
      %s24 = sphi 0, %s21
      %s25 = sphi 0, %s22
      %s26 = sphi 0, %s23
      %s27 = sphi 0, %s24
      %s28 = sphi 0, %s25
      %s44 = sphi 0, %s46
      %s47 = sphi 0, %s44
      %s48 = sphi 0, %s47
      %s64 = sphi 0, %s48
      %s72 = sphi 0, %s74
      %s75 = sphi 0, %s72
      %s76 = sphi 0, %s75
      %s92 = sphi 0, %s76
      %s100 = sphi 0, %s102
      %s103 = sphi 0, %s100
      %s104 = sphi 0, %s103
      %s120 = sphi 0, %s104
      %s130 = sphi 0, %s132
      %s133 = sphi 0, %s130
      %s134 = sphi 0, %s133
      %s150 = sphi 0, %s134
      %s158 = sphi 0, %s160
      %s161 = sphi 0, %s158
      %s162 = sphi 0, %s161
      %s178 = sphi 0, %s162
    $region4: #{transformer_layer.4} parent=1 // loop_header_branch
      %16 = sbr.rel (%p14) target = $region8
    $region5: #{transformer_layer.4} parent=1 // loop_body
      %s18 = ssub.s32 %s13, 1
      %s19 = ssub.s32 %s13, 2
      %s29 = sadd.s32 1, %s22
      %p30 = scmp.ge.s32.totalorder %s29, 1
      %s31 = scalar_select %p30, 0, %s29
      %s32 = sadd.s32 1, %s21
      %s33 = scalar_select %p30, %s32, %s21
      %p34 = scmp.ge.s32.totalorder %s33, 1
      %s35 = scalar_select %p34, 0, %s33
      %s36 = sadd.s32 1, %s20
      %s37 = scalar_select %p34, %s36, %s20
      %p38 = scmp.ge.s32.totalorder %s37, 2
      %s39 = scalar_select %p38, 0, %s37
      %s40 = ssub.s32 %s20, %s39
      %s41 = ssub.s32 %s21, %s35
      %s42 = sor.u32 %s40, %s41
      %p43 = scmp.eq.s32.totalorder %s42, 0
      %s45 = sadd.s32 %s44, 1
      %s46 = scalar_select %p43, %s44, %s45
      %p49 = pneg %p43
      %p50 = scmp.eq.s32.totalorder %s13, 1
      %p51 = por %p49, %p50
      %p52 = scmp.ne.s32.totalorder %s44, %s47
      %p53 = scmp.eq.s32.totalorder %s13, 0
      %p54 = por %p52, %p53
      %p55 = scmp.ne.s32.totalorder %s44, %s47
      %p56 = scmp.eq.s32.totalorder %s18, 1
      %p57 = por %p55, %p56
      %p58 = scmp.ne.s32.totalorder %s47, %s48
      %p59 = scmp.eq.s32.totalorder %s18, 0
      %p60 = por %p58, %p59
      %p61 = scmp.ne.s32.totalorder %s47, %s48
      %p62 = scmp.eq.s32.totalorder %s19, 1
      %p63 = por %p61, %p62
      %p65 = scmp.ne.s32.totalorder %s48, %s64
      %p66 = scmp.eq.s32.totalorder %s19, 0
      %p67 = por %p65, %p66
      %s68 = ssub.s32 %s20, %s39
      %s69 = ssub.s32 %s22, %s31
      %s70 = sor.u32 %s68, %s69
      %p71 = scmp.eq.s32.totalorder %s70, 0
      %s73 = sadd.s32 %s72, 1
      %s74 = scalar_select %p71, %s72, %s73
      %p77 = pneg %p71
      %p78 = scmp.eq.s32.totalorder %s13, 1
      %p79 = por %p77, %p78
      %p80 = scmp.ne.s32.totalorder %s72, %s75
      %p81 = scmp.eq.s32.totalorder %s13, 0
      %p82 = por %p80, %p81
      %p83 = scmp.ne.s32.totalorder %s72, %s75
      %p84 = scmp.eq.s32.totalorder %s18, 1
      %p85 = por %p83, %p84
      %p86 = scmp.ne.s32.totalorder %s75, %s76
      %p87 = scmp.eq.s32.totalorder %s18, 0
      %p88 = por %p86, %p87
      %p89 = scmp.ne.s32.totalorder %s75, %s76
      %p90 = scmp.eq.s32.totalorder %s19, 1
      %p91 = por %p89, %p90
      %p93 = scmp.ne.s32.totalorder %s76, %s92
      %p94 = scmp.eq.s32.totalorder %s19, 0
      %p95 = por %p93, %p94
      %s96 = ssub.s32 %s20, %s39
      %s97 = ssub.s32 %s22, %s31
      %s98 = sor.u32 %s96, %s97
      %p99 = scmp.eq.s32.totalorder %s98, 0
      %s101 = sadd.s32 %s100, 1
      %s102 = scalar_select %p99, %s100, %s101
      %p105 = pneg %p99
      %p106 = scmp.eq.s32.totalorder %s13, 1
      %p107 = por %p105, %p106
      %p108 = scmp.ne.s32.totalorder %s100, %s103
      %p109 = scmp.eq.s32.totalorder %s13, 0
      %p110 = por %p108, %p109
      %p111 = scmp.ne.s32.totalorder %s100, %s103
      %p112 = scmp.eq.s32.totalorder %s18, 1
      %p113 = por %p111, %p112
      %p114 = scmp.ne.s32.totalorder %s103, %s104
      %p115 = scmp.eq.s32.totalorder %s18, 0
      %p116 = por %p114, %p115
      %p117 = scmp.ne.s32.totalorder %s103, %s104
      %p118 = scmp.eq.s32.totalorder %s19, 1
      %p119 = por %p117, %p118
      %p121 = scmp.ne.s32.totalorder %s104, %s120
      %p122 = scmp.eq.s32.totalorder %s19, 0
      %p123 = por %p121, %p122
      %s124 = ssub.s32 %s20, %s39
      %s125 = ssub.s32 %s21, %s35
      %s126 = sor.u32 %s124, %s125
      %s127 = ssub.s32 %s22, %s31
      %s128 = sor.u32 %s126, %s127
      %p129 = scmp.eq.s32.totalorder %s128, 0
      %s131 = sadd.s32 %s130, 1
      %s132 = scalar_select %p129, %s130, %s131
      %p135 = pneg %p129
      %p136 = scmp.eq.s32.totalorder %s13, 1
      %p137 = por %p135, %p136
      %p138 = scmp.ne.s32.totalorder %s130, %s133
      %p139 = scmp.eq.s32.totalorder %s13, 0
      %p140 = por %p138, %p139
      %p141 = scmp.ne.s32.totalorder %s130, %s133
      %p142 = scmp.eq.s32.totalorder %s18, 1
      %p143 = por %p141, %p142
      %p144 = scmp.ne.s32.totalorder %s133, %s134
      %p145 = scmp.eq.s32.totalorder %s18, 0
      %p146 = por %p144, %p145
      %p147 = scmp.ne.s32.totalorder %s133, %s134
      %p148 = scmp.eq.s32.totalorder %s19, 1
      %p149 = por %p147, %p148
      %p151 = scmp.ne.s32.totalorder %s134, %s150
      %p152 = scmp.eq.s32.totalorder %s19, 0
      %p153 = por %p151, %p152
      %s154 = ssub.s32 %s20, %s39
      %s155 = ssub.s32 %s21, %s35
      %s156 = sor.u32 %s154, %s155
      %p157 = scmp.eq.s32.totalorder %s156, 0
      %s159 = sadd.s32 %s158, 1
      %s160 = scalar_select %p157, %s158, %s159
      %p163 = pneg %p157
      %p164 = scmp.eq.s32.totalorder %s13, 1
      %p165 = por %p163, %p164
      %p166 = scmp.ne.s32.totalorder %s158, %s161
      %p167 = scmp.eq.s32.totalorder %s13, 0
      %p168 = por %p166, %p167
      %p169 = scmp.ne.s32.totalorder %s158, %s161
      %p170 = scmp.eq.s32.totalorder %s18, 1
      %p171 = por %p169, %p170
      %p172 = scmp.ne.s32.totalorder %s161, %s162
      %p173 = scmp.eq.s32.totalorder %s18, 0
      %p174 = por %p172, %p173
      %p175 = scmp.ne.s32.totalorder %s161, %s162
      %p176 = scmp.eq.s32.totalorder %s19, 1
      %p177 = por %p175, %p176
      %p179 = scmp.ne.s32.totalorder %s162, %s178
      %p180 = scmp.eq.s32.totalorder %s19, 0
      %p181 = por %p179, %p180
      %p182 = scmp.le.s32.totalorder 1, %s13
      %p183 = scmp.lt.s32.totalorder %s13, 3
      %p184 = pnand %p182, %p183
      %p185 = pneg %p184
      // Predicated region
      $region9: #{transformer_layer.4} parent=5 // pred_check
        _
      $region10: #{transformer_layer.4} parent=5 // pred_check_branch
        %187 = sbr.rel (%p184) target = $region12
      $region11: #{transformer_layer.4} parent=5 // pred_region
        %s188 = ssub.s32 %s13, 1
      $region12: #{transformer_layer.4} parent=5 // pred_fallthru
        _
      %p189 = scmp.lt.s32.totalorder %s13, 2
      // Predicated region
      $region13: #{transformer_layer.4} parent=5 // pred_check
        %p190 = pneg %p189
      $region14: #{transformer_layer.4} parent=5 // pred_check_branch
        %192 = sbr.rel (%p190) target = $region16
      $region15: #{transformer_layer.4} parent=5 // pred_region
        // Predicated region
        $region17: #{transformer_layer.4} parent=15 // pred_check
          %p193 = pneg %p54
        $region18: #{transformer_layer.4} parent=15 // pred_check_branch
          %195 = sbr.rel (%p193) target = $region20
        $region19: #{transformer_layer.4} parent=15 // pred_region
          %p196 = scmp.lt.s32.totalorder %s20, 1
          %s197 = scalar_select %p196, %s20, 1
          %p198 = scmp.lt.s32.totalorder %s21, 0
          %s199 = scalar_select %p198, %s21, 0
          %s200 = sadd.s32 %s199, %s197
          %s201 = smul.addr %s200, 4
          %s202 = scalar_lea.vmem %s0, %s201
        $region20: #{transformer_layer.4} parent=15 // pred_fallthru
          _
        // Predicated region
        $region21: #{transformer_layer.4} parent=15 // pred_check
          %p203 = pneg %p82
        $region22: #{transformer_layer.4} parent=15 // pred_check_branch
          %205 = sbr.rel (%p203) target = $region24
        $region23: #{transformer_layer.4} parent=15 // pred_region
          %p206 = scmp.lt.s32.totalorder %s20, 1
          %s207 = scalar_select %p206, %s20, 1
          %p208 = scmp.lt.s32.totalorder %s22, 0
          %s209 = scalar_select %p208, %s22, 0
          %s210 = sadd.s32 %s209, %s207
          %s211 = smul.addr %s210, 4
          %s212 = scalar_lea.vmem %s1, %s211
        $region24: #{transformer_layer.4} parent=15 // pred_fallthru
          _
        // Predicated region
        $region25: #{transformer_layer.4} parent=15 // pred_check
          %p213 = pneg %p110
        $region26: #{transformer_layer.4} parent=15 // pred_check_branch
          %215 = sbr.rel (%p213) target = $region28
        $region27: #{transformer_layer.4} parent=15 // pred_region
          %p216 = scmp.lt.s32.totalorder %s20, 1
          %s217 = scalar_select %p216, %s20, 1
          %p218 = scmp.lt.s32.totalorder %s22, 0
          %s219 = scalar_select %p218, %s22, 0
          %s220 = sadd.s32 %s219, %s217
          %s221 = smul.addr %s220, 4
          %s222 = scalar_lea.vmem %s2, %s221
        $region28: #{transformer_layer.4} parent=15 // pred_fallthru
          _
        // Predicated region
        $region29: #{transformer_layer.4} parent=15 // pred_check
          %p223 = pneg %p140
        $region30: #{transformer_layer.4} parent=15 // pred_check_branch
          %225 = sbr.rel (%p223) target = $region32
        $region31: #{transformer_layer.4} parent=15 // pred_region
          %s226 = sand.u32 %s130, 1
          %s227 = scalar_lea.sflag [#allocation6], %s226
          %s228 = sand.u32 %s130, 1
          %s229 = smul.addr %s228, 8
          %s230 = scalar_lea.vmem [#allocation5], %s229
          %232 = vsyncadd %s227, 0
          %s233 = sadd.s32 %s22, %s21
          %s234 = sadd.s32 %s233, %s20
          %s235 = smul.addr %s234, 8
          %s236 = scalar_lea.hbm %s3, %s235
          %s238 = sshll.u32 %s236, 4
          %s239 = int_to_ptr.hbm [resolvable:$true] %s238
          %s240 = sshll.u32 %s230, 4
          %s241 = int_to_ptr.vmem [resolvable:$true] %s240
          %243 = dma.hbm_to_vmem [thread:$0]  %s239, 128, %s241, %s227
        $region32: #{transformer_layer.4} parent=15 // pred_fallthru
          _
      $region16: #{transformer_layer.4} parent=5 // pred_fallthru
        _
      %p244 = scmp.le.s32.totalorder 1, %s13
      %p245 = scmp.lt.s32.totalorder %s13, 3
      %p246 = pnand %p244, %p245
      %p247 = pneg %p246
      // Predicated region
      $region33: #{transformer_layer.4} parent=5 // pred_check
        _
      $region34: #{transformer_layer.4} parent=5 // pred_check_branch
        %249 = sbr.rel (%p246) target = $region36
      $region35: #{transformer_layer.4} parent=5 // pred_region
        %s250 = ssub.s32 %s13, 1
        %s251 = sand.u32 %s133, 1
        %s252 = scalar_lea.sflag [#allocation6], %s251
        %s253 = sand.u32 %s133, 1
        %s254 = smul.addr %s253, 8
        %s255 = scalar_lea.vmem [#allocation5], %s254
        // Predicated region
        $region37: #{transformer_layer.4} parent=35 // pred_check
          %p256 = pneg %p146
        $region38: #{transformer_layer.4} parent=35 // pred_check_branch
          %258 = sbr.rel (%p256) target = $region40
        $region39: #{transformer_layer.4} parent=35 // pred_region
          %260 = dma.done %s252, 128
        $region40: #{transformer_layer.4} parent=35 // pred_fallthru
          _
        %p261 = scmp.lt.s32.totalorder %s23, 1
        %s262 = scalar_select %p261, %s23, 1
        %p263 = scmp.lt.s32.totalorder %s24, 0
        %s264 = scalar_select %p263, %s24, 0
        %s265 = sadd.s32 %s264, %s262
        %s266 = smul.addr %s265, 4
        %s267 = scalar_lea.vmem %s0, %s266
        %p268 = pneg %p60
        %p269 = pneg %p57
        %p270 = scmp.lt.s32.totalorder %s23, 1
        %s271 = scalar_select %p270, %s23, 1
        %p272 = scmp.lt.s32.totalorder %s25, 0
        %s273 = scalar_select %p272, %s25, 0
        %s274 = sadd.s32 %s273, %s271
        %s275 = smul.addr %s274, 4
        %s276 = scalar_lea.vmem %s1, %s275
        %p277 = pneg %p88
        %p278 = pneg %p85
        %p279 = scmp.lt.s32.totalorder %s23, 1
        %s280 = scalar_select %p279, %s23, 1
        %p281 = scmp.lt.s32.totalorder %s25, 0
        %s282 = scalar_select %p281, %s25, 0
        %s283 = sadd.s32 %s282, %s280
        %s284 = smul.addr %s283, 4
        %s285 = scalar_lea.vmem %s2, %s284
        %p286 = pneg %p116
        %p287 = pneg %p113
        %s288 = sand.u32 %s133, 1
        %s289 = scalar_lea.sflag [#allocation6], %s288
        %s290 = sand.u32 %s133, 1
        %s291 = smul.addr %s290, 8
        %s292 = scalar_lea.vmem [#allocation5], %s291
        %p293 = pneg %p146
        %p294 = pneg %p143
        %p295 = pneg %p174
        %p296 = pneg %p171
        %p297 = scmp.lt.s32.totalorder %s23, 1
        %s298 = scalar_select %p297, %s23, 1
        %p299 = scmp.lt.s32.totalorder %s24, 0
        %s300 = scalar_select %p299, %s24, 0
        %s301 = sadd.s32 %s300, %s298
        %s302 = smul.addr %s301, 4
        %s303 = scalar_lea.vmem %s4, %s302
        %p304 = scmp.lt.s32.totalorder %s23, 1
        %s305 = scalar_select %p304, %s23, 1
        %p306 = scmp.lt.s32.totalorder %s24, 0
        %s307 = scalar_select %p306, %s24, 0
        %s308 = sadd.s32 %s307, %s305
        %s309 = smul.addr %s308, 4
        %s310 = scalar_lea.vmem %s0, %s309
        %p311 = scmp.lt.s32.totalorder %s23, 1
        %s312 = scalar_select %p311, %s23, 1
        %p313 = scmp.lt.s32.totalorder %s25, 0
        %s314 = scalar_select %p313, %s25, 0
        %s315 = sadd.s32 %s314, %s312
        %s316 = smul.addr %s315, 4
        %s317 = scalar_lea.vmem %s1, %s316
        %p318 = scmp.lt.s32.totalorder %s23, 1
        %s319 = scalar_select %p318, %s23, 1
        %p320 = scmp.lt.s32.totalorder %s25, 0
        %s321 = scalar_select %p320, %s25, 0
        %s322 = sadd.s32 %s321, %s319
        %s323 = smul.addr %s322, 4
        %s324 = scalar_lea.vmem %s2, %s323
        %p325 = scmp.lt.s32.totalorder %s23, 1
        %s326 = scalar_select %p325, %s23, 1
        %p327 = scmp.lt.s32.totalorder %s24, 0
        %s328 = scalar_select %p327, %s24, 0
        %s329 = sadd.s32 %s328, %s326
        %s330 = smul.addr %s329, 4
        %s331 = scalar_lea.vmem %s4, %s330
        %p333 = scmp.eq.s32.totalorder %s25, 0
        // Predicated region
        $region41: #{transformer_layer.4} parent=35 // pred_check
          %p334 = pneg %p333
        $region42: #{transformer_layer.4} parent=35 // pred_check_branch
          %336 = sbr.rel (%p334) target = $region44
        $region43: #{transformer_layer.4} parent=35 // pred_region
          %vm337 = vcmask 7168
          %338 = vst.msk [vmem:[#allocation2] sm:$0xff] %vm337, -inf
          %339 = vst.msk [vmem:[#allocation2 + $0x8] sm:$0xff] %vm337, -inf
          %340 = vst.msk [vmem:[#allocation2 + $0x10] sm:$0xff] %vm337, -inf
          %341 = vst.msk [vmem:[#allocation2 + $0x18] sm:$0xff] %vm337, -inf
          %342 = vst.msk [vmem:[#allocation3] sm:$0xff] %vm337, 0.0
          %343 = vst.msk [vmem:[#allocation3 + $0x8] sm:$0xff] %vm337, 0.0
          %344 = vst.msk [vmem:[#allocation3 + $0x10] sm:$0xff] %vm337, 0.0
          %345 = vst.msk [vmem:[#allocation3 + $0x18] sm:$0xff] %vm337, 0.0
          %vm346 = vcmask 64512
          %347 = vst.msk [vmem:[#allocation4] sm:$0xff] %vm346, 0.0
          %348 = vst.msk [vmem:[#allocation4 + $0x8] sm:$0xff] %vm346, 0.0
          %349 = vst.msk [vmem:[#allocation4 + $0x10] sm:$0xff] %vm346, 0.0
          %350 = vst.msk [vmem:[#allocation4 + $0x18] sm:$0xff] %vm346, 0.0
        $region44: #{transformer_layer.4} parent=35 // pred_fallthru
          _
        %v351 = vld [vmem:[%s310] sm:$0xf]
        %353 = vrot.lane.b32.xlu0 %v351, 120
        %v354 = vpop.permute.xlu0 %353
        %355 = vrot.lane.b32.xlu0 %v351, 112
        %v356 = vpop.permute.xlu0 %355
        %357 = vrot.lane.b32.xlu0 %v351, 104
        %v358 = vpop.permute.xlu0 %357
        %v361 = vpack.i.b16 %v354, %v351
        %v362 = vshrl.u32 %v351, 16
        %v363 = vshrl.u32 %v354, 16
        %v364 = vpack.i.b16 %v363, %v362
        %v367 = vpack.i.b16 %v358, %v356
        %v368 = vshrl.u32 %v356, 16
        %v369 = vshrl.u32 %v358, 16
        %v370 = vpack.i.b16 %v369, %v368
        %v373 = vunpack.c.l.s4 1983009808
        %v374 = vunpack.c.0.s8 %v373
        %v375 = vperm.slane %v361, %v374
        %v378 = vunpack.c.l.s4 1983009808
        %v379 = vunpack.c.0.s8 %v378
        %v380 = vperm.slane %v367, %v379
        %v381 = vrot.slane %v380, 4
        %vm382 = vcmask 1047556
        %v383 = vsel %vm382, %v381, %v375
        %v384 = vrot.slane %v375, 4
        %v385 = vsel %vm382, %v380, %v384
        %v387 = vunpack.c.l.s4 1934713408
        %v388 = vunpack.c.0.s8 %v387
        %v389 = vperm.slane %v383, %v388
        %v391 = vunpack.c.l.s4 1934713408
        %v392 = vunpack.c.0.s8 %v391
        %v393 = vperm.slane %v385, %v392
        %v394 = vrot.slane %v389, 4
        %v395 = vsel %vm382, 0, %v394
        %v396 = vrot.slane %v393, 4
        %v397 = vsel %vm382, 0, %v396
        %v400 = vunpack.c.l.s4 1983009808
        %v401 = vunpack.c.0.s8 %v400
        %v402 = vperm.slane %v364, %v401
        %v405 = vunpack.c.l.s4 1983009808
        %v406 = vunpack.c.0.s8 %v405
        %v407 = vperm.slane %v370, %v406
        %v408 = vrot.slane %v407, 4
        %v409 = vsel %vm382, %v408, %v402
        %v410 = vrot.slane %v402, 4
        %v411 = vsel %vm382, %v407, %v410
        %v413 = vunpack.c.l.s4 1934713408
        %v414 = vunpack.c.0.s8 %v413
        %v415 = vperm.slane %v409, %v414
        %v417 = vunpack.c.l.s4 1934713408
        %v418 = vunpack.c.0.s8 %v417
        %v419 = vperm.slane %v411, %v418
        %v420 = vrot.slane %v415, 4
        %v421 = vsel %vm382, 0, %v420
        %v422 = vrot.slane %v419, 4
        %v423 = vsel %vm382, 0, %v422
        %v424 = vld [vmem:[%s317] sm:$0xf]
        %426 = vrot.lane.b32.xlu0 %v424, 120
        %v427 = vpop.permute.xlu0 %426
        %428 = vrot.lane.b32.xlu0 %v424, 112
        %v429 = vpop.permute.xlu0 %428
        %430 = vrot.lane.b32.xlu0 %v424, 104
        %v431 = vpop.permute.xlu0 %430
        %v434 = vpack.i.b16 %v427, %v424
        %v435 = vshrl.u32 %v424, 16
        %v436 = vshrl.u32 %v427, 16
        %v437 = vpack.i.b16 %v436, %v435
        %v440 = vpack.i.b16 %v431, %v429
        %v441 = vshrl.u32 %v429, 16
        %v442 = vshrl.u32 %v431, 16
        %v443 = vpack.i.b16 %v442, %v441
        %v446 = vunpack.c.l.s4 1983009808
        %v447 = vunpack.c.0.s8 %v446
        %v448 = vperm.slane %v434, %v447
        %v451 = vunpack.c.l.s4 1983009808
        %v452 = vunpack.c.0.s8 %v451
        %v453 = vperm.slane %v440, %v452
        %v454 = vrot.slane %v453, 4
        %v455 = vsel %vm382, %v454, %v448
        %v456 = vrot.slane %v448, 4
        %v457 = vsel %vm382, %v453, %v456
        %v459 = vunpack.c.l.s4 1934713408
        %v460 = vunpack.c.0.s8 %v459
        %v461 = vperm.slane %v455, %v460
        %v463 = vunpack.c.l.s4 1934713408
        %v464 = vunpack.c.0.s8 %v463
        %v465 = vperm.slane %v457, %v464
        %v466 = vrot.slane %v461, 4
        %v467 = vsel %vm382, 0, %v466
        %v468 = vrot.slane %v465, 4
        %v469 = vsel %vm382, 0, %v468
        %v472 = vunpack.c.l.s4 1983009808
        %v473 = vunpack.c.0.s8 %v472
        %v474 = vperm.slane %v437, %v473
        %v477 = vunpack.c.l.s4 1983009808
        %v478 = vunpack.c.0.s8 %v477
        %v479 = vperm.slane %v443, %v478
        %v480 = vrot.slane %v479, 4
        %v481 = vsel %vm382, %v480, %v474
        %v482 = vrot.slane %v474, 4
        %v483 = vsel %vm382, %v479, %v482
        %v485 = vunpack.c.l.s4 1934713408
        %v486 = vunpack.c.0.s8 %v485
        %v487 = vperm.slane %v481, %v486
        %v489 = vunpack.c.l.s4 1934713408
        %v490 = vunpack.c.0.s8 %v489
        %v491 = vperm.slane %v483, %v490
        %v492 = vrot.slane %v487, 4
        %v493 = vsel %vm382, 0, %v492
        %v494 = vrot.slane %v491, 4
        %v495 = vsel %vm382, 0, %v494
        %v496 = vld [vmem:[%s324] sm:$0xf]
        %498 = vrot.lane.b32.xlu0 %v496, 120
        %v499 = vpop.permute.xlu0 %498
        %500 = vrot.lane.b32.xlu0 %v496, 112
        %v501 = vpop.permute.xlu0 %500
        %502 = vrot.lane.b32.xlu0 %v496, 104
        %v503 = vpop.permute.xlu0 %502
        %v506 = vpack.i.b16 %v499, %v496
        %v507 = vshrl.u32 %v496, 16
        %v508 = vshrl.u32 %v499, 16
        %v509 = vpack.i.b16 %v508, %v507
        %v512 = vpack.i.b16 %v503, %v501
        %v513 = vshrl.u32 %v501, 16
        %v514 = vshrl.u32 %v503, 16
        %v515 = vpack.i.b16 %v514, %v513
        %v518 = vunpack.c.l.s4 1983009808
        %v519 = vunpack.c.0.s8 %v518
        %v520 = vperm.slane %v506, %v519
        %v523 = vunpack.c.l.s4 1983009808
        %v524 = vunpack.c.0.s8 %v523
        %v525 = vperm.slane %v512, %v524
        %v526 = vrot.slane %v525, 4
        %v527 = vsel %vm382, %v526, %v520
        %v528 = vrot.slane %v520, 4
        %v529 = vsel %vm382, %v525, %v528
        %v531 = vunpack.c.l.s4 1934713408
        %v532 = vunpack.c.0.s8 %v531
        %v533 = vperm.slane %v527, %v532
        %v535 = vunpack.c.l.s4 1934713408
        %v536 = vunpack.c.0.s8 %v535
        %v537 = vperm.slane %v529, %v536
        %v538 = vrot.slane %v533, 4
        %v539 = vsel %vm382, 0, %v538
        %v540 = vrot.slane %v537, 4
        %v541 = vsel %vm382, 0, %v540
        %v544 = vunpack.c.l.s4 1983009808
        %v545 = vunpack.c.0.s8 %v544
        %v546 = vperm.slane %v509, %v545
        %v549 = vunpack.c.l.s4 1983009808
        %v550 = vunpack.c.0.s8 %v549
        %v551 = vperm.slane %v515, %v550
        %v552 = vrot.slane %v551, 4
        %v553 = vsel %vm382, %v552, %v546
        %v554 = vrot.slane %v546, 4
        %v555 = vsel %vm382, %v551, %v554
        %v557 = vunpack.c.l.s4 1934713408
        %v558 = vunpack.c.0.s8 %v557
        %v559 = vperm.slane %v553, %v558
        %v561 = vunpack.c.l.s4 1934713408
        %v562 = vunpack.c.0.s8 %v561
        %v563 = vperm.slane %v555, %v562
        %v564 = vrot.slane %v559, 4
        %v565 = vsel %vm382, 0, %v564
        %v566 = vrot.slane %v563, 4
        %v567 = vsel %vm382, 0, %v566
        %v568 = vsel %vm382, %v396, %v389
        %v570 = vunpack.c.l.s4 1983009808
        %v571 = vunpack.c.0.s8 %v570
        %v572 = vperm.slane %v568, %v571
        %v573 = vrot.slane %v397, 4
        %v574 = vsel %vm382, %v573, %v395
        %v576 = vunpack.c.l.s4 1983009808
        %v577 = vunpack.c.0.s8 %v576
        %v578 = vperm.slane %v574, %v577
        %v579 = vrot.slane %v578, 4
        %v580 = vsel %vm382, %v579, %v572
        %v582 = vunpack.c.l.s4 1934713408
        %v583 = vunpack.c.0.s8 %v582
        %v584 = vperm.slane %v580, %v583
        %v585 = vrot.slane %v584, 4
        %v586 = vsel %vm382, 0, %v585
        %v587 = vsel %vm382, %v422, %v415
        %v589 = vunpack.c.l.s4 1983009808
        %v590 = vunpack.c.0.s8 %v589
        %v591 = vperm.slane %v587, %v590
        %v592 = vrot.slane %v423, 4
        %v593 = vsel %vm382, %v592, %v421
        %v595 = vunpack.c.l.s4 1983009808
        %v596 = vunpack.c.0.s8 %v595
        %v597 = vperm.slane %v593, %v596
        %v598 = vrot.slane %v597, 4
        %v599 = vsel %vm382, %v598, %v591
        %v601 = vunpack.c.l.s4 1934713408
        %v602 = vunpack.c.0.s8 %v601
        %v603 = vperm.slane %v599, %v602
        %v604 = vrot.slane %v603, 4
        %v605 = vsel %vm382, 0, %v604
        %v608 = vpack.i.b16 %v603, %v584
        %v609 = vshrl.u32 %v584, 16
        %v610 = vshrl.u32 %v603, 16
        %v611 = vpack.i.b16 %v610, %v609
        %v614 = vpack.i.b16 %v605, %v586
        %v615 = vshrl.u32 %v586, 16
        %v616 = vshrl.u32 %v605, 16
        %v617 = vpack.i.b16 %v616, %v615
        %618 = vxpose.xlu0.c.b16.start [1/8] %v461, 128
        %619 = vxpose.xlu0.c.b16.cont [2/8] 0, 128
        %620 = vxpose.xlu0.c.b16.cont [3/8] 0, 128
        %621 = vxpose.xlu0.c.b16.cont [4/8] 0, 128
        %622 = vxpose.xlu0.c.b16.cont [5/8] 0, 128
        %623 = vxpose.xlu0.c.b16.cont [6/8] 0, 128
        %624 = vxpose.xlu0.c.b16.cont [7/8] 0, 128
        %625 = vxpose.xlu0.c.b16.end [8/8] 0, 128
        %v626 = vpop.trf.xlu0
        %v627 = vpop.trf.xlu0
        %v628 = vpop.trf.xlu0
        %v629 = vpop.trf.xlu0
        %v630 = vpop.trf.xlu0
        %v631 = vpop.trf.xlu0
        %v632 = vpop.trf.xlu0
        %v633 = vpop.trf.xlu0
        %634 = vxpose.xlu0.c.b16.start [1/8] %v487, 128
        %635 = vxpose.xlu0.c.b16.cont [2/8] 0, 128
        %636 = vxpose.xlu0.c.b16.cont [3/8] 0, 128
        %637 = vxpose.xlu0.c.b16.cont [4/8] 0, 128
        %638 = vxpose.xlu0.c.b16.cont [5/8] 0, 128
        %639 = vxpose.xlu0.c.b16.cont [6/8] 0, 128
        %640 = vxpose.xlu0.c.b16.cont [7/8] 0, 128
        %641 = vxpose.xlu0.c.b16.end [8/8] 0, 128
        %v642 = vpop.trf.xlu0
        %v643 = vpop.trf.xlu0
        %v644 = vpop.trf.xlu0
        %v645 = vpop.trf.xlu0
        %v646 = vpop.trf.xlu0
        %v647 = vpop.trf.xlu0
        %v648 = vpop.trf.xlu0
        %v649 = vpop.trf.xlu0
        %650 = vxpose.xlu0.c.b16.start [1/8] %v467, 128
        %651 = vxpose.xlu0.c.b16.cont [2/8] 0, 128
        %652 = vxpose.xlu0.c.b16.cont [3/8] 0, 128
        %653 = vxpose.xlu0.c.b16.cont [4/8] 0, 128
        %654 = vxpose.xlu0.c.b16.cont [5/8] 0, 128
        %655 = vxpose.xlu0.c.b16.cont [6/8] 0, 128
        %656 = vxpose.xlu0.c.b16.cont [7/8] 0, 128
        %657 = vxpose.xlu0.c.b16.end [8/8] 0, 128
        %v658 = vpop.trf.xlu0
        %v659 = vpop.trf.xlu0
        %v660 = vpop.trf.xlu0
        %v661 = vpop.trf.xlu0
        %v662 = vpop.trf.xlu0
        %v663 = vpop.trf.xlu0
        %v664 = vpop.trf.xlu0
        %v665 = vpop.trf.xlu0
        %666 = vxpose.xlu0.c.b16.start [1/8] %v493, 128
        %667 = vxpose.xlu0.c.b16.cont [2/8] 0, 128
        %668 = vxpose.xlu0.c.b16.cont [3/8] 0, 128
        %669 = vxpose.xlu0.c.b16.cont [4/8] 0, 128
        %670 = vxpose.xlu0.c.b16.cont [5/8] 0, 128
        %671 = vxpose.xlu0.c.b16.cont [6/8] 0, 128
        %672 = vxpose.xlu0.c.b16.cont [7/8] 0, 128
        %673 = vxpose.xlu0.c.b16.end [8/8] 0, 128
        %v674 = vpop.trf.xlu0
        %v675 = vpop.trf.xlu0
        %v676 = vpop.trf.xlu0
        %v677 = vpop.trf.xlu0
        %v678 = vpop.trf.xlu0
        %v679 = vpop.trf.xlu0
        %v680 = vpop.trf.xlu0
        %v681 = vpop.trf.xlu0
        %682 = vxpose.xlu0.c.b16.start [1/8] %v465, 128
        %683 = vxpose.xlu0.c.b16.cont [2/8] 0, 128
        %684 = vxpose.xlu0.c.b16.cont [3/8] 0, 128
        %685 = vxpose.xlu0.c.b16.cont [4/8] 0, 128
        %686 = vxpose.xlu0.c.b16.cont [5/8] 0, 128
        %687 = vxpose.xlu0.c.b16.cont [6/8] 0, 128
        %688 = vxpose.xlu0.c.b16.cont [7/8] 0, 128
        %689 = vxpose.xlu0.c.b16.end [8/8] 0, 128
        %v690 = vpop.trf.xlu0
        %v691 = vpop.trf.xlu0
        %v692 = vpop.trf.xlu0
        %v693 = vpop.trf.xlu0
        %v694 = vpop.trf.xlu0
        %v695 = vpop.trf.xlu0
        %v696 = vpop.trf.xlu0
        %v697 = vpop.trf.xlu0
        %698 = vxpose.xlu0.c.b16.start [1/8] %v491, 128
        %699 = vxpose.xlu0.c.b16.cont [2/8] 0, 128
        %700 = vxpose.xlu0.c.b16.cont [3/8] 0, 128
        %701 = vxpose.xlu0.c.b16.cont [4/8] 0, 128
        %702 = vxpose.xlu0.c.b16.cont [5/8] 0, 128
        %703 = vxpose.xlu0.c.b16.cont [6/8] 0, 128
        %704 = vxpose.xlu0.c.b16.cont [7/8] 0, 128
        %705 = vxpose.xlu0.c.b16.end [8/8] 0, 128
        %v706 = vpop.trf.xlu0
        %v707 = vpop.trf.xlu0
        %v708 = vpop.trf.xlu0
        %v709 = vpop.trf.xlu0
        %v710 = vpop.trf.xlu0
        %v711 = vpop.trf.xlu0
        %v712 = vpop.trf.xlu0
        %v713 = vpop.trf.xlu0
        %714 = vxpose.xlu0.c.b16.start [1/8] %v469, 128
        %715 = vxpose.xlu0.c.b16.cont [2/8] 0, 128
        %716 = vxpose.xlu0.c.b16.cont [3/8] 0, 128
        %717 = vxpose.xlu0.c.b16.cont [4/8] 0, 128
        %718 = vxpose.xlu0.c.b16.cont [5/8] 0, 128
        %719 = vxpose.xlu0.c.b16.cont [6/8] 0, 128
        %720 = vxpose.xlu0.c.b16.cont [7/8] 0, 128
        %721 = vxpose.xlu0.c.b16.end [8/8] 0, 128
        %v722 = vpop.trf.xlu0
        %v723 = vpop.trf.xlu0
        %v724 = vpop.trf.xlu0
        %v725 = vpop.trf.xlu0
        %v726 = vpop.trf.xlu0
        %v727 = vpop.trf.xlu0
        %v728 = vpop.trf.xlu0
        %v729 = vpop.trf.xlu0
        %730 = vxpose.xlu0.c.b16.start [1/8] %v495, 128
        %731 = vxpose.xlu0.c.b16.cont [2/8] 0, 128
        %732 = vxpose.xlu0.c.b16.cont [3/8] 0, 128
        %733 = vxpose.xlu0.c.b16.cont [4/8] 0, 128
        %734 = vxpose.xlu0.c.b16.cont [5/8] 0, 128
        %735 = vxpose.xlu0.c.b16.cont [6/8] 0, 128
        %736 = vxpose.xlu0.c.b16.cont [7/8] 0, 128
        %737 = vxpose.xlu0.c.b16.end [8/8] 0, 128
        %v738 = vpop.trf.xlu0
        %v739 = vpop.trf.xlu0
        %v740 = vpop.trf.xlu0
        %v741 = vpop.trf.xlu0
        %v742 = vpop.trf.xlu0
        %v743 = vpop.trf.xlu0
        %v744 = vpop.trf.xlu0
        %v745 = vpop.trf.xlu0
        %v746 = vrot.slane %v690, 4
        %v747 = vsel %vm382, %v746, %v626
        %v749 = vunpack.c.l.s4 1983009808
        %v750 = vunpack.c.0.s8 %v749
        %v751 = vperm.slane %v747, %v750
        %v752 = vrot.slane %v722, 4
        %v753 = vsel %vm382, %v752, %v658
        %v755 = vunpack.c.l.s4 1983009808
        %v756 = vunpack.c.0.s8 %v755
        %v757 = vperm.slane %v753, %v756
        %v758 = vrot.slane %v757, 4
        %v759 = vsel %vm382, %v758, %v751
        %v760 = vrot.slane %v751, 4
        %v761 = vsel %vm382, %v757, %v760
        %v763 = vunpack.c.l.s4 1934713408
        %v764 = vunpack.c.0.s8 %v763
        %v765 = vperm.slane %v759, %v764
        %v767 = vunpack.c.l.s4 1934713408
        %v768 = vunpack.c.0.s8 %v767
        %v769 = vperm.slane %v761, %v768
        %v770 = vrot.slane %v765, 4
        %v771 = vsel %vm382, 0, %v770
        %v772 = vrot.slane %v769, 4
        %v773 = vsel %vm382, 0, %v772
        %v774 = vrot.slane %v706, 4
        %v775 = vsel %vm382, %v774, %v642
        %v777 = vunpack.c.l.s4 1983009808
        %v778 = vunpack.c.0.s8 %v777
        %v779 = vperm.slane %v775, %v778
        %v780 = vrot.slane %v738, 4
        %v781 = vsel %vm382, %v780, %v674
        %v783 = vunpack.c.l.s4 1983009808
        %v784 = vunpack.c.0.s8 %v783
        %v785 = vperm.slane %v781, %v784
        %v786 = vrot.slane %v785, 4
        %v787 = vsel %vm382, %v786, %v779
        %v788 = vrot.slane %v779, 4
        %v789 = vsel %vm382, %v785, %v788
        %v791 = vunpack.c.l.s4 1934713408
        %v792 = vunpack.c.0.s8 %v791
        %v793 = vperm.slane %v787, %v792
        %v795 = vunpack.c.l.s4 1934713408
        %v796 = vunpack.c.0.s8 %v795
        %v797 = vperm.slane %v789, %v796
        %v798 = vrot.slane %v793, 4
        %v799 = vsel %vm382, 0, %v798
        %v800 = vrot.slane %v797, 4
        %v801 = vsel %vm382, 0, %v800
        %v804 = vpack.i.b16 %v793, %v765
        %v806 = vshrl.u32 %v765, 16
        %v807 = vshrl.u32 %v793, 16
        %v808 = vpack.i.b16 %v807, %v806
        %v812 = vpack.i.b16 %v799, %v771
        %v814 = vshrl.u32 %v771, 16
        %v815 = vshrl.u32 %v799, 16
        %v816 = vpack.i.b16 %v815, %v814
        %v820 = vpack.i.b16 %v797, %v769
        %v822 = vshrl.u32 %v769, 16
        %v823 = vshrl.u32 %v797, 16
        %v824 = vpack.i.b16 %v823, %v822
        %v828 = vpack.i.b16 %v801, %v773
        %v830 = vshrl.u32 %v773, 16
        %v831 = vshrl.u32 %v801, 16
        %v832 = vpack.i.b16 %v831, %v830
        %834 = vxpose.xlu0.c.b16.start [1/8] %v804, 128
        %835 = vxpose.xlu0.c.b16.cont [2/8] 0, 128
        %836 = vxpose.xlu0.c.b16.cont [3/8] 0, 128
        %837 = vxpose.xlu0.c.b16.cont [4/8] 0, 128
        %838 = vxpose.xlu0.c.b16.cont [5/8] 0, 128
        %839 = vxpose.xlu0.c.b16.cont [6/8] 0, 128
        %840 = vxpose.xlu0.c.b16.cont [7/8] 0, 128
        %841 = vxpose.xlu0.c.b16.end [8/8] 0, 128
        %v842 = vpop.trf.xlu0
        %v843 = vpop.trf.xlu0
        %v844 = vpop.trf.xlu0
        %v845 = vpop.trf.xlu0
        %v846 = vpop.trf.xlu0
        %v847 = vpop.trf.xlu0
        %v848 = vpop.trf.xlu0
        %v849 = vpop.trf.xlu0
        %850 = vxpose.xlu0.c.b16.start [1/8] %v808, 128
        %851 = vxpose.xlu0.c.b16.cont [2/8] 0, 128
        %852 = vxpose.xlu0.c.b16.cont [3/8] 0, 128
        %853 = vxpose.xlu0.c.b16.cont [4/8] 0, 128
        %854 = vxpose.xlu0.c.b16.cont [5/8] 0, 128
        %855 = vxpose.xlu0.c.b16.cont [6/8] 0, 128
        %856 = vxpose.xlu0.c.b16.cont [7/8] 0, 128
        %857 = vxpose.xlu0.c.b16.end [8/8] 0, 128
        %v858 = vpop.trf.xlu0
        %v859 = vpop.trf.xlu0
        %v860 = vpop.trf.xlu0
        %v861 = vpop.trf.xlu0
        %v862 = vpop.trf.xlu0
        %v863 = vpop.trf.xlu0
        %v864 = vpop.trf.xlu0
        %v865 = vpop.trf.xlu0
        %866 = vxpose.xlu0.c.b16.start [1/8] %v812, 128
        %867 = vxpose.xlu0.c.b16.cont [2/8] 0, 128
        %868 = vxpose.xlu0.c.b16.cont [3/8] 0, 128
        %869 = vxpose.xlu0.c.b16.cont [4/8] 0, 128
        %870 = vxpose.xlu0.c.b16.cont [5/8] 0, 128
        %871 = vxpose.xlu0.c.b16.cont [6/8] 0, 128
        %872 = vxpose.xlu0.c.b16.cont [7/8] 0, 128
        %873 = vxpose.xlu0.c.b16.end [8/8] 0, 128
        %v874 = vpop.trf.xlu0
        %v875 = vpop.trf.xlu0
        %v876 = vpop.trf.xlu0
        %v877 = vpop.trf.xlu0
        %v878 = vpop.trf.xlu0
        %v879 = vpop.trf.xlu0
        %v880 = vpop.trf.xlu0
        %v881 = vpop.trf.xlu0
        %882 = vxpose.xlu0.c.b16.start [1/8] %v816, 128
        %883 = vxpose.xlu0.c.b16.cont [2/8] 0, 128
        %884 = vxpose.xlu0.c.b16.cont [3/8] 0, 128
        %885 = vxpose.xlu0.c.b16.cont [4/8] 0, 128
        %886 = vxpose.xlu0.c.b16.cont [5/8] 0, 128
        %887 = vxpose.xlu0.c.b16.cont [6/8] 0, 128
        %888 = vxpose.xlu0.c.b16.cont [7/8] 0, 128
        %889 = vxpose.xlu0.c.b16.end [8/8] 0, 128
        %v890 = vpop.trf.xlu0
        %v891 = vpop.trf.xlu0
        %v892 = vpop.trf.xlu0
        %v893 = vpop.trf.xlu0
        %v894 = vpop.trf.xlu0
        %v895 = vpop.trf.xlu0
        %v896 = vpop.trf.xlu0
        %v897 = vpop.trf.xlu0
        %898 = vxpose.xlu0.c.b16.start [1/8] %v820, 128
        %899 = vxpose.xlu0.c.b16.cont [2/8] 0, 128
        %900 = vxpose.xlu0.c.b16.cont [3/8] 0, 128
        %901 = vxpose.xlu0.c.b16.cont [4/8] 0, 128
        %902 = vxpose.xlu0.c.b16.cont [5/8] 0, 128
        %903 = vxpose.xlu0.c.b16.cont [6/8] 0, 128
        %904 = vxpose.xlu0.c.b16.cont [7/8] 0, 128
        %905 = vxpose.xlu0.c.b16.end [8/8] 0, 128
        %v906 = vpop.trf.xlu0
        %v907 = vpop.trf.xlu0
        %v908 = vpop.trf.xlu0
        %v909 = vpop.trf.xlu0
        %v910 = vpop.trf.xlu0
        %v911 = vpop.trf.xlu0
        %v912 = vpop.trf.xlu0
        %v913 = vpop.trf.xlu0
        %914 = vxpose.xlu0.c.b16.start [1/8] %v824, 128
        %915 = vxpose.xlu0.c.b16.cont [2/8] 0, 128
        %916 = vxpose.xlu0.c.b16.cont [3/8] 0, 128
        %917 = vxpose.xlu0.c.b16.cont [4/8] 0, 128
        %918 = vxpose.xlu0.c.b16.cont [5/8] 0, 128
        %919 = vxpose.xlu0.c.b16.cont [6/8] 0, 128
        %920 = vxpose.xlu0.c.b16.cont [7/8] 0, 128
        %921 = vxpose.xlu0.c.b16.end [8/8] 0, 128
        %v922 = vpop.trf.xlu0
        %v923 = vpop.trf.xlu0
        %v924 = vpop.trf.xlu0
        %v925 = vpop.trf.xlu0
        %v926 = vpop.trf.xlu0
        %v927 = vpop.trf.xlu0
        %v928 = vpop.trf.xlu0
        %v929 = vpop.trf.xlu0
        %930 = vxpose.xlu0.c.b16.start [1/8] %v828, 128
        %931 = vxpose.xlu0.c.b16.cont [2/8] 0, 128
        %932 = vxpose.xlu0.c.b16.cont [3/8] 0, 128
        %933 = vxpose.xlu0.c.b16.cont [4/8] 0, 128
        %934 = vxpose.xlu0.c.b16.cont [5/8] 0, 128
        %935 = vxpose.xlu0.c.b16.cont [6/8] 0, 128
        %936 = vxpose.xlu0.c.b16.cont [7/8] 0, 128
        %937 = vxpose.xlu0.c.b16.end [8/8] 0, 128
        %v938 = vpop.trf.xlu0
        %v939 = vpop.trf.xlu0
        %v940 = vpop.trf.xlu0
        %v941 = vpop.trf.xlu0
        %v942 = vpop.trf.xlu0
        %v943 = vpop.trf.xlu0
        %v944 = vpop.trf.xlu0
        %v945 = vpop.trf.xlu0
        %946 = vxpose.xlu0.c.b16.start [1/8] %v832, 128
        %947 = vxpose.xlu0.c.b16.cont [2/8] 0, 128
        %948 = vxpose.xlu0.c.b16.cont [3/8] 0, 128
        %949 = vxpose.xlu0.c.b16.cont [4/8] 0, 128
        %950 = vxpose.xlu0.c.b16.cont [5/8] 0, 128
        %951 = vxpose.xlu0.c.b16.cont [6/8] 0, 128
        %952 = vxpose.xlu0.c.b16.cont [7/8] 0, 128
        %953 = vxpose.xlu0.c.b16.end [8/8] 0, 128
        %v954 = vpop.trf.xlu0
        %v955 = vpop.trf.xlu0
        %v956 = vpop.trf.xlu0
        %v957 = vpop.trf.xlu0
        %v958 = vpop.trf.xlu0
        %v959 = vpop.trf.xlu0
        %v960 = vpop.trf.xlu0
        %v961 = vpop.trf.xlu0
        %v962 = vrot.slane %v906, 4
        %v963 = vsel %vm382, %v962, %v842
        %v965 = vunpack.c.l.s4 1983009808
        %v966 = vunpack.c.0.s8 %v965
        %v967 = vperm.slane %v963, %v966
        %v968 = vrot.slane %v938, 4
        %v969 = vsel %vm382, %v968, %v874
        %v971 = vunpack.c.l.s4 1983009808
        %v972 = vunpack.c.0.s8 %v971
        %v973 = vperm.slane %v969, %v972
        %v974 = vrot.slane %v973, 4
        %v975 = vsel %vm382, %v974, %v967
        %v977 = vunpack.c.l.s4 1934713408
        %v978 = vunpack.c.0.s8 %v977
        %v979 = vperm.slane %v975, %v978
        %v980 = vrot.slane %v979, 4
        %v981 = vsel %vm382, 0, %v980
        %v982 = vrot.slane %v922, 4
        %v983 = vsel %vm382, %v982, %v858
        %v985 = vunpack.c.l.s4 1983009808
        %v986 = vunpack.c.0.s8 %v985
        %v987 = vperm.slane %v983, %v986
        %v988 = vrot.slane %v954, 4
        %v989 = vsel %vm382, %v988, %v890
        %v991 = vunpack.c.l.s4 1983009808
        %v992 = vunpack.c.0.s8 %v991
        %v993 = vperm.slane %v989, %v992
        %v994 = vrot.slane %v993, 4
        %v995 = vsel %vm382, %v994, %v987
        %v997 = vunpack.c.l.s4 1934713408
        %v998 = vunpack.c.0.s8 %v997
        %v999 = vperm.slane %v995, %v998
        %v1000 = vrot.slane %v999, 4
        %v1001 = vsel %vm382, 0, %v1000
        %v1004 = vpack.i.b16 %v999, %v979
        %v1005 = vshrl.u32 %v979, 16
        %v1006 = vshrl.u32 %v999, 16
        %v1007 = vpack.i.b16 %v1006, %v1005
        %v1010 = vpack.i.b16 %v1001, %v981
        %v1011 = vshrl.u32 %v981, 16
        %v1012 = vshrl.u32 %v1001, 16
        %v1013 = vpack.i.b16 %v1012, %v1011
        %vm1014 = vcmask 64512
        %v1016 = vsel %vm1014, %v608, 0
        %vm1018 = vcmask 1043456
        %v1020 = vsel %vm1018, %v1004, 0
        %1022 = vmatpush.bf16.msra.mxu0 0
        %1023 = vmatpush.bf16.msra.mxu0 0
        %1024 = vmatpush.bf16.msra.mxu0 0
        %1025 = vmatpush.bf16.msra.mxu0 0
        %1026 = vmatpush.bf16.msra.mxu0 0
        %1027 = vmatpush.bf16.msra.mxu0 0
        %1028 = vmatpush.bf16.msra.mxu0 0
        %1029 = vmatpush.bf16.msra.mxu0 %v1020
        %1030 = vmatmul.bf16.gmra.mxu0 %v1016
        %v1031 = vpop.f32.mrf.mxu0
        %v1032 = vadd.f32 0.0, %v1031
        %v1033 = vpop.f32.mrf.mxu0
        %1034 = vdwg.mxu0
        %v1036 = vsel %vm1014, %v611, 0
        %v1039 = vsel %vm1018, %v1007, 0
        %1041 = vmatpush.bf16.msra.mxu0 0
        %1042 = vmatpush.bf16.msra.mxu0 0
        %1043 = vmatpush.bf16.msra.mxu0 0
        %1044 = vmatpush.bf16.msra.mxu0 0
        %1045 = vmatpush.bf16.msra.mxu0 0
        %1046 = vmatpush.bf16.msra.mxu0 0
        %1047 = vmatpush.bf16.msra.mxu0 0
        %1048 = vmatpush.bf16.msra.mxu0 %v1039
        %1049 = vmatmul.bf16.gmra.mxu0 %v1036
        %v1050 = vpop.f32.mrf.mxu0
        %v1051 = vadd.f32 0.0, %v1050
        %v1052 = vpop.f32.mrf.mxu0
        %1053 = vdwg.mxu0
        %v1055 = vsel %vm1014, %v614, 0
        %v1058 = vsel %vm1018, %v1010, 0
        %1060 = vmatpush.bf16.msra.mxu0 0
        %1061 = vmatpush.bf16.msra.mxu0 0
        %1062 = vmatpush.bf16.msra.mxu0 0
        %1063 = vmatpush.bf16.msra.mxu0 0
        %1064 = vmatpush.bf16.msra.mxu0 0
        %1065 = vmatpush.bf16.msra.mxu0 0
        %1066 = vmatpush.bf16.msra.mxu0 0
        %1067 = vmatpush.bf16.msra.mxu0 %v1058
        %1068 = vmatmul.bf16.gmra.mxu0 %v1055
        %v1069 = vpop.f32.mrf.mxu0
        %v1070 = vadd.f32 0.0, %v1069
        %v1071 = vpop.f32.mrf.mxu0
        %1072 = vdwg.mxu0
        %v1074 = vsel %vm1014, %v617, 0
        %v1077 = vsel %vm1018, %v1013, 0
        %1079 = vmatpush.bf16.msra.mxu0 0
        %1080 = vmatpush.bf16.msra.mxu0 0
        %1081 = vmatpush.bf16.msra.mxu0 0
        %1082 = vmatpush.bf16.msra.mxu0 0
        %1083 = vmatpush.bf16.msra.mxu0 0
        %1084 = vmatpush.bf16.msra.mxu0 0
        %1085 = vmatpush.bf16.msra.mxu0 0
        %1086 = vmatpush.bf16.msra.mxu0 %v1077
        %1087 = vmatmul.bf16.gmra.mxu0 %v1074
        %v1088 = vpop.f32.mrf.mxu0
        %v1089 = vadd.f32 0.0, %v1088
        %v1090 = vpop.f32.mrf.mxu0
        %1091 = vdwg.mxu0
        %v1092 = vmul.f32 %v1032, 0.35355338
        %v1093 = vmul.f32 %v1051, 0.35355338
        %v1094 = vmul.f32 %v1070, 0.35355338
        %v1095 = vmul.f32 %v1089, 0.35355338
        %v1096 = vld [vmem:[%s255] sm:$0xff]
        %vm1097 = vcmp.ne.s32.totalorder %v1096, 0
        %v1098 = vsel %vm1097, 1, 0
        %vm1099 = vcmp.eq.s32.totalorder %v1098, 1
        %v1100 = vsel %vm1099, -1e+30, %v1092
        %v1101 = vsel %vm1099, -1e+30, %v1093
        %v1102 = vsel %vm1099, -1e+30, %v1094
        %v1103 = vsel %vm1099, -1e+30, %v1095
        %v1104 = vld [vmem:[#allocation2] sm:$0xff]
        %v1105 = vld [vmem:[#allocation2 + $0x8] sm:$0xff]
        %v1106 = vld [vmem:[#allocation2 + $0x10] sm:$0xff]
        %v1107 = vld [vmem:[#allocation2 + $0x18] sm:$0xff]
        %v1108 = vsel %vm1014, %v1100, -inf
        %1109 = vmax.xlane.f32.xlu0 %v1108
        %v1110 = vpop.xlane.xlu0 %1109
        %v1111 = vsel %vm1014, %v1101, -inf
        %1112 = vmax.xlane.f32.xlu0 %v1111
        %v1113 = vpop.xlane.xlu0 %1112
        %v1114 = vsel %vm1014, %v1102, -inf
        %1115 = vmax.xlane.f32.xlu0 %v1114
        %v1116 = vpop.xlane.xlu0 %1115
        %v1117 = vsel %vm1014, %v1103, -inf
        %1118 = vmax.xlane.f32.xlu0 %v1117
        %v1119 = vpop.xlane.xlu0 %1118
        %v1120 = vmax.f32 %v1104, %v1110
        %v1121 = vmax.f32 %v1105, %v1113
        %v1122 = vmax.f32 %v1106, %v1116
        %v1123 = vmax.f32 %v1107, %v1119
        %v1124 = vsub.f32 %v1104, %v1120
        %v1125 = vsub.f32 %v1105, %v1121
        %v1126 = vsub.f32 %v1106, %v1122
        %v1127 = vsub.f32 %v1107, %v1123
        %v1128 = vmul.f32 %v1124, 1.442695
        %v1129 = vpow.pop %v1128
        %v1130 = vmul.f32 %v1125, 1.442695
        %v1131 = vpow.pop %v1130
        %v1132 = vmul.f32 %v1126, 1.442695
        %v1133 = vpow.pop %v1132
        %v1134 = vmul.f32 %v1127, 1.442695
        %v1135 = vpow.pop %v1134
        %1137 = vset.pattern.permute.xlu0 0
        %1138 = vperm.xlu0 %1137, %v1120
        %v1139 = vpop.permute.xlu0 %1138
        %1142 = vset.pattern.permute.xlu0 0
        %1143 = vperm.xlu0 %1142, %v1121
        %v1144 = vpop.permute.xlu0 %1143
        %1147 = vset.pattern.permute.xlu0 0
        %1148 = vperm.xlu0 %1147, %v1122
        %v1149 = vpop.permute.xlu0 %1148
        %1152 = vset.pattern.permute.xlu0 0
        %1153 = vperm.xlu0 %1152, %v1123
        %v1154 = vpop.permute.xlu0 %1153
        %v1156 = vsub.f32 %v1100, %v1139
        %v1157 = vsub.f32 %v1101, %v1144
        %v1158 = vsub.f32 %v1102, %v1149
        %v1159 = vsub.f32 %v1103, %v1154
        %v1160 = vmul.f32 %v1156, 1.442695
        %v1161 = vpow.pop %v1160
        %v1162 = vmul.f32 %v1157, 1.442695
        %v1163 = vpow.pop %v1162
        %v1164 = vmul.f32 %v1158, 1.442695
        %v1165 = vpow.pop %v1164
        %v1166 = vmul.f32 %v1159, 1.442695
        %v1167 = vpow.pop %v1166
        %v1168 = vld [vmem:[#allocation3] sm:$0xff]
        %v1169 = vld [vmem:[#allocation3 + $0x8] sm:$0xff]
        %v1170 = vld [vmem:[#allocation3 + $0x10] sm:$0xff]
        %v1171 = vld [vmem:[#allocation3 + $0x18] sm:$0xff]
        %v1172 = vmul.f32 %v1129, %v1168
        %v1173 = vmul.f32 %v1131, %v1169
        %v1174 = vmul.f32 %v1133, %v1170
        %v1175 = vmul.f32 %v1135, %v1171
        %v1176 = vsel %vm1014, %v1161, 0.0
        %1177 = vadd.xlane.f32.xlu0 %v1176
        %v1178 = vpop.xlane.xlu0 %1177
        %v1179 = vsel %vm1014, %v1163, 0.0
        %1180 = vadd.xlane.f32.xlu0 %v1179
        %v1181 = vpop.xlane.xlu0 %1180
        %v1182 = vsel %vm1014, %v1165, 0.0
        %1183 = vadd.xlane.f32.xlu0 %v1182
        %v1184 = vpop.xlane.xlu0 %1183
        %v1185 = vsel %vm1014, %v1167, 0.0
        %1186 = vadd.xlane.f32.xlu0 %v1185
        %v1187 = vpop.xlane.xlu0 %1186
        %v1188 = vadd.f32 %v1172, %v1178
        %v1189 = vadd.f32 %v1173, %v1181
        %v1190 = vadd.f32 %v1174, %v1184
        %v1191 = vadd.f32 %v1175, %v1187
        %vm1192 = vcmask 7168
        %1193 = vst.msk [vmem:[#allocation3] sm:$0xff] %vm1192, %v1188
        %1194 = vst.msk [vmem:[#allocation3 + $0x8] sm:$0xff] %vm1192, %v1189
        %1195 = vst.msk [vmem:[#allocation3 + $0x10] sm:$0xff] %vm1192, %v1190
        %1196 = vst.msk [vmem:[#allocation3 + $0x18] sm:$0xff] %vm1192, %v1191
        %v1197 = vpack.c.bf16 %v1161, %v1161
        %v1198 = vpack.c.bf16 %v1163, %v1163
        %v1199 = vpack.c.bf16 %v1165, %v1165
        %v1200 = vpack.c.bf16 %v1167, %v1167
        %v1201 = vsel %vm382, %v540, %v533
        %v1203 = vunpack.c.l.s4 1983009808
        %v1204 = vunpack.c.0.s8 %v1203
        %v1205 = vperm.slane %v1201, %v1204
        %v1206 = vrot.slane %v541, 4
        %v1207 = vsel %vm382, %v1206, %v539
        %v1209 = vunpack.c.l.s4 1983009808
        %v1210 = vunpack.c.0.s8 %v1209
        %v1211 = vperm.slane %v1207, %v1210
        %v1212 = vrot.slane %v1211, 4
        %v1213 = vsel %vm382, %v1212, %v1205
        %v1215 = vunpack.c.l.s4 1934713408
        %v1216 = vunpack.c.0.s8 %v1215
        %v1217 = vperm.slane %v1213, %v1216
        %v1218 = vrot.slane %v1217, 4
        %v1219 = vsel %vm382, 0, %v1218
        %v1220 = vsel %vm382, %v566, %v559
        %v1222 = vunpack.c.l.s4 1983009808
        %v1223 = vunpack.c.0.s8 %v1222
        %v1224 = vperm.slane %v1220, %v1223
        %v1225 = vrot.slane %v567, 4
        %v1226 = vsel %vm382, %v1225, %v565
        %v1228 = vunpack.c.l.s4 1983009808
        %v1229 = vunpack.c.0.s8 %v1228
        %v1230 = vperm.slane %v1226, %v1229
        %v1231 = vrot.slane %v1230, 4
        %v1232 = vsel %vm382, %v1231, %v1224
        %v1234 = vunpack.c.l.s4 1934713408
        %v1235 = vunpack.c.0.s8 %v1234
        %v1236 = vperm.slane %v1232, %v1235
        %v1237 = vrot.slane %v1236, 4
        %v1238 = vsel %vm382, 0, %v1237
        %v1241 = vpack.i.b16 %v1236, %v1217
        %v1242 = vshrl.u32 %v1217, 16
        %v1243 = vshrl.u32 %v1236, 16
        %v1244 = vpack.i.b16 %v1243, %v1242
        %v1247 = vpack.i.b16 %v1238, %v1219
        %v1248 = vshrl.u32 %v1219, 16
        %v1249 = vshrl.u32 %v1238, 16
        %v1250 = vpack.i.b16 %v1249, %v1248
        %v1252 = vsel %vm1014, %v1197, 0
        %v1255 = vsel %vm1018, %v1241, 0
        %1257 = vmatpush.bf16.msra.mxu0 0
        %1258 = vmatpush.bf16.msra.mxu0 0
        %1259 = vmatpush.bf16.msra.mxu0 0
        %1260 = vmatpush.bf16.msra.mxu0 0
        %1261 = vmatpush.bf16.msra.mxu0 0
        %1262 = vmatpush.bf16.msra.mxu0 0
        %1263 = vmatpush.bf16.msra.mxu0 0
        %1264 = vmatpush.bf16.msra.mxu0 %v1255
        %1265 = vmatmul.bf16.gmra.mxu0 %v1252
        %v1266 = vpop.f32.mrf.mxu0
        %v1267 = vadd.f32 0.0, %v1266
        %v1268 = vpop.f32.mrf.mxu0
        %1269 = vdwg.mxu0
        %v1271 = vsel %vm1014, %v1198, 0
        %v1274 = vsel %vm1018, %v1244, 0
        %1276 = vmatpush.bf16.msra.mxu0 0
        %1277 = vmatpush.bf16.msra.mxu0 0
        %1278 = vmatpush.bf16.msra.mxu0 0
        %1279 = vmatpush.bf16.msra.mxu0 0
        %1280 = vmatpush.bf16.msra.mxu0 0
        %1281 = vmatpush.bf16.msra.mxu0 0
        %1282 = vmatpush.bf16.msra.mxu0 0
        %1283 = vmatpush.bf16.msra.mxu0 %v1274
        %1284 = vmatmul.bf16.gmra.mxu0 %v1271
        %v1285 = vpop.f32.mrf.mxu0
        %v1286 = vadd.f32 0.0, %v1285
        %v1287 = vpop.f32.mrf.mxu0
        %1288 = vdwg.mxu0
        %v1290 = vsel %vm1014, %v1199, 0
        %v1293 = vsel %vm1018, %v1247, 0
        %1295 = vmatpush.bf16.msra.mxu0 0
        %1296 = vmatpush.bf16.msra.mxu0 0
        %1297 = vmatpush.bf16.msra.mxu0 0
        %1298 = vmatpush.bf16.msra.mxu0 0
        %1299 = vmatpush.bf16.msra.mxu0 0
        %1300 = vmatpush.bf16.msra.mxu0 0
        %1301 = vmatpush.bf16.msra.mxu0 0
        %1302 = vmatpush.bf16.msra.mxu0 %v1293
        %1303 = vmatmul.bf16.gmra.mxu0 %v1290
        %v1304 = vpop.f32.mrf.mxu0
        %v1305 = vadd.f32 0.0, %v1304
        %v1306 = vpop.f32.mrf.mxu0
        %1307 = vdwg.mxu0
        %v1309 = vsel %vm1014, %v1200, 0
        %v1312 = vsel %vm1018, %v1250, 0
        %1314 = vmatpush.bf16.msra.mxu0 0
        %1315 = vmatpush.bf16.msra.mxu0 0
        %1316 = vmatpush.bf16.msra.mxu0 0
        %1317 = vmatpush.bf16.msra.mxu0 0
        %1318 = vmatpush.bf16.msra.mxu0 0
        %1319 = vmatpush.bf16.msra.mxu0 0
        %1320 = vmatpush.bf16.msra.mxu0 0
        %1321 = vmatpush.bf16.msra.mxu0 %v1312
        %1322 = vmatmul.bf16.gmra.mxu0 %v1309
        %v1323 = vpop.f32.mrf.mxu0
        %v1324 = vadd.f32 0.0, %v1323
        %v1325 = vpop.f32.mrf.mxu0
        %1326 = vdwg.mxu0
        %v1327 = vld [vmem:[#allocation4] sm:$0xff]
        %v1328 = vld [vmem:[#allocation4 + $0x8] sm:$0xff]
        %v1329 = vld [vmem:[#allocation4 + $0x10] sm:$0xff]
        %v1330 = vld [vmem:[#allocation4 + $0x18] sm:$0xff]
        %1332 = vset.pattern.permute.xlu0 0
        %1333 = vperm.xlu0 %1332, %v1129
        %v1334 = vpop.permute.xlu0 %1333
        %1337 = vset.pattern.permute.xlu0 0
        %1338 = vperm.xlu0 %1337, %v1131
        %v1339 = vpop.permute.xlu0 %1338
        %1342 = vset.pattern.permute.xlu0 0
        %1343 = vperm.xlu0 %1342, %v1133
        %v1344 = vpop.permute.xlu0 %1343
        %1347 = vset.pattern.permute.xlu0 0
        %1348 = vperm.xlu0 %1347, %v1135
        %v1349 = vpop.permute.xlu0 %1348
        %v1351 = vmul.f32 %v1334, %v1327
        %v1352 = vmul.f32 %v1339, %v1328
        %v1353 = vmul.f32 %v1344, %v1329
        %v1354 = vmul.f32 %v1349, %v1330
        %v1355 = vadd.f32 %v1351, %v1267
        %v1356 = vadd.f32 %v1352, %v1286
        %v1357 = vadd.f32 %v1353, %v1305
        %v1358 = vadd.f32 %v1354, %v1324
        %1359 = vst.msk [vmem:[#allocation4] sm:$0xff] %vm1014, %v1355
        %1360 = vst.msk [vmem:[#allocation4 + $0x8] sm:$0xff] %vm1014, %v1356
        %1361 = vst.msk [vmem:[#allocation4 + $0x10] sm:$0xff] %vm1014, %v1357
        %1362 = vst.msk [vmem:[#allocation4 + $0x18] sm:$0xff] %vm1014, %v1358
        %1363 = vst.msk [vmem:[#allocation2] sm:$0xff] %vm1192, %v1120
        %1364 = vst.msk [vmem:[#allocation2 + $0x8] sm:$0xff] %vm1192, %v1121
        %1365 = vst.msk [vmem:[#allocation2 + $0x10] sm:$0xff] %vm1192, %v1122
        %1366 = vst.msk [vmem:[#allocation2 + $0x18] sm:$0xff] %vm1192, %v1123
        // Predicated region
        $region45: #{transformer_layer.4} parent=35 // pred_check
          %p1367 = pneg %p333
        $region46: #{transformer_layer.4} parent=35 // pred_check_branch
          %1369 = sbr.rel (%p1367) target = $region48
        $region47: #{transformer_layer.4} parent=35 // pred_region
          %v1370 = vld [vmem:[#allocation3] sm:$0xff]
          %v1371 = vld [vmem:[#allocation3 + $0x8] sm:$0xff]
          %v1372 = vld [vmem:[#allocation3 + $0x10] sm:$0xff]
          %v1373 = vld [vmem:[#allocation3 + $0x18] sm:$0xff]
          %v1374 = vrcp.pop %v1370
          %v1375 = vrcp.pop %v1371
          %v1376 = vrcp.pop %v1372
          %v1377 = vrcp.pop %v1373
          %v1378 = vld [vmem:[#allocation4] sm:$0xff]
          %v1379 = vld [vmem:[#allocation4 + $0x8] sm:$0xff]
          %v1380 = vld [vmem:[#allocation4 + $0x10] sm:$0xff]
          %v1381 = vld [vmem:[#allocation4 + $0x18] sm:$0xff]
          %1383 = vset.pattern.permute.xlu0 0
          %1384 = vperm.xlu0 %1383, %v1374
          %v1385 = vpop.permute.xlu0 %1384
          %1388 = vset.pattern.permute.xlu0 0
          %1389 = vperm.xlu0 %1388, %v1375
          %v1390 = vpop.permute.xlu0 %1389
          %1393 = vset.pattern.permute.xlu0 0
          %1394 = vperm.xlu0 %1393, %v1376
          %v1395 = vpop.permute.xlu0 %1394
          %1398 = vset.pattern.permute.xlu0 0
          %1399 = vperm.xlu0 %1398, %v1377
          %v1400 = vpop.permute.xlu0 %1399
          %v1402 = vmul.f32 %v1378, %v1385
          %v1403 = vmul.f32 %v1379, %v1390
          %v1404 = vmul.f32 %v1380, %v1395
          %v1405 = vmul.f32 %v1381, %v1400
          %v1406 = vrot.slane %v1404, 4
          %vm1407 = vcmask 1047556
          %v1408 = vsel %vm1407, %v1406, %v1402
          %v1409 = vrot.slane %v1402, 4
          %v1410 = vsel %vm1407, %v1404, %v1409
          %v1412 = vunpack.c.l.s4 1983009808
          %v1413 = vunpack.c.0.s8 %v1412
          %v1414 = vperm.slane %v1408, %v1413
          %v1416 = vunpack.c.l.s4 1983009808
          %v1417 = vunpack.c.0.s8 %v1416
          %v1418 = vperm.slane %v1410, %v1417
          %v1419 = vrot.slane %v1405, 4
          %v1420 = vsel %vm1407, %v1419, %v1403
          %v1421 = vrot.slane %v1403, 4
          %v1422 = vsel %vm1407, %v1405, %v1421
          %v1424 = vunpack.c.l.s4 1983009808
          %v1425 = vunpack.c.0.s8 %v1424
          %v1426 = vperm.slane %v1420, %v1425
          %v1428 = vunpack.c.l.s4 1983009808
          %v1429 = vunpack.c.0.s8 %v1428
          %v1430 = vperm.slane %v1422, %v1429
          %v1431 = vrot.slane %v1426, 4
          %v1432 = vsel %vm1407, %v1431, %v1414
          %v1433 = vrot.slane %v1414, 4
          %v1434 = vsel %vm1407, %v1426, %v1433
          %v1436 = vunpack.c.l.s4 1934713408
          %v1437 = vunpack.c.0.s8 %v1436
          %v1438 = vperm.slane %v1432, %v1437
          %v1440 = vunpack.c.l.s4 1934713408
          %v1441 = vunpack.c.0.s8 %v1440
          %v1442 = vperm.slane %v1434, %v1441
          %v1443 = vrot.slane %v1430, 4
          %v1444 = vsel %vm1407, %v1443, %v1418
          %v1445 = vrot.slane %v1418, 4
          %v1446 = vsel %vm1407, %v1430, %v1445
          %v1448 = vunpack.c.l.s4 1934713408
          %v1449 = vunpack.c.0.s8 %v1448
          %v1450 = vperm.slane %v1444, %v1449
          %v1452 = vunpack.c.l.s4 1934713408
          %v1453 = vunpack.c.0.s8 %v1452
          %v1454 = vperm.slane %v1446, %v1453
          %v1455 = vrot.slane %v1438, 4
          %v1456 = vsel %vm1407, 0.0, %v1455
          %v1457 = vrot.slane %v1442, 4
          %v1458 = vsel %vm1407, 0.0, %v1457
          %v1459 = vrot.slane %v1450, 4
          %v1460 = vsel %vm1407, 0.0, %v1459
          %v1461 = vrot.slane %v1454, 4
          %v1462 = vsel %vm1407, 0.0, %v1461
          %v1463 = vsel %vm1407, %v1457, %v1438
          %v1465 = vunpack.c.l.s4 1983009808
          %v1466 = vunpack.c.0.s8 %v1465
          %v1467 = vperm.slane %v1463, %v1466
          %v1468 = vrot.slane %v1458, 4
          %v1469 = vsel %vm1407, %v1468, %v1456
          %v1471 = vunpack.c.l.s4 1983009808
          %v1472 = vunpack.c.0.s8 %v1471
          %v1473 = vperm.slane %v1469, %v1472
          %v1474 = vsel %vm1407, %v1461, %v1450
          %v1476 = vunpack.c.l.s4 1983009808
          %v1477 = vunpack.c.0.s8 %v1476
          %v1478 = vperm.slane %v1474, %v1477
          %v1479 = vrot.slane %v1462, 4
          %v1480 = vsel %vm1407, %v1479, %v1460
          %v1482 = vunpack.c.l.s4 1983009808
          %v1483 = vunpack.c.0.s8 %v1482
          %v1484 = vperm.slane %v1480, %v1483
          %v1485 = vrot.slane %v1473, 4
          %v1486 = vsel %vm1407, %v1485, %v1467
          %v1487 = vrot.slane %v1467, 4
          %v1488 = vsel %vm1407, %v1473, %v1487
          %v1490 = vunpack.c.l.s4 1934713408
          %v1491 = vunpack.c.0.s8 %v1490
          %v1492 = vperm.slane %v1486, %v1491
          %v1494 = vunpack.c.l.s4 1934713408
          %v1495 = vunpack.c.0.s8 %v1494
          %v1496 = vperm.slane %v1488, %v1495
          %v1497 = vrot.slane %v1484, 4
          %v1498 = vsel %vm1407, %v1497, %v1478
          %v1499 = vrot.slane %v1478, 4
          %v1500 = vsel %vm1407, %v1484, %v1499
          %v1502 = vunpack.c.l.s4 1934713408
          %v1503 = vunpack.c.0.s8 %v1502
          %v1504 = vperm.slane %v1498, %v1503
          %v1506 = vunpack.c.l.s4 1934713408
          %v1507 = vunpack.c.0.s8 %v1506
          %v1508 = vperm.slane %v1500, %v1507
          %v1509 = vrot.slane %v1504, 4
          %v1510 = vsel %vm1407, %v1509, %v1492
          %v1511 = vrot.slane %v1492, 4
          %v1512 = vsel %vm1407, %v1504, %v1511
          %v1513 = vrot.slane %v1508, 4
          %v1514 = vsel %vm1407, %v1513, %v1496
          %v1515 = vrot.slane %v1496, 4
          %v1516 = vsel %vm1407, %v1508, %v1515
          %1518 = vrot.lane.b32.xlu0 %v1512, 8
          %v1519 = vpop.permute.xlu0 %1518
          %1522 = vrot.lane.b32.xlu0 %v1514, 16
          %v1523 = vpop.permute.xlu0 %1522
          %1526 = vrot.lane.b32.xlu0 %v1516, 24
          %v1527 = vpop.permute.xlu0 %1526
          %v1529 = vsel %vm1014, %v1510, %v1519
          %vm1530 = vcmask 130048
          %v1531 = vsel %vm1530, %v1529, %v1523
          %vm1532 = vcmask 195584
          %v1533 = vsel %vm1532, %v1531, %v1527
          %v1534 = vpack.c.bf16 %v1533, %v1533
          %vm1535 = vcmask 257024
          %1536 = vst.msk [vmem:[%s331] sm:$0xf] %vm1535, %v1534
        $region48: #{transformer_layer.4} parent=35 // pred_fallthru
          _
        %p1537 = scmp.lt.s32.totalorder %s23, 1
        %s1538 = scalar_select %p1537, %s23, 1
        %p1539 = scmp.lt.s32.totalorder %s24, 0
        %s1540 = scalar_select %p1539, %s24, 0
        %s1541 = sadd.s32 %s1540, %s1538
        %s1542 = smul.addr %s1541, 4
        %s1543 = scalar_lea.vmem %s4, %s1542
        // Predicated region
        $region49: #{transformer_layer.4} parent=35 // pred_check
          %p1544 = pneg %p171
        $region50: #{transformer_layer.4} parent=35 // pred_check_branch
          %1546 = sbr.rel (%p1544) target = $region52
        $region51: #{transformer_layer.4} parent=35 // pred_region
          _
        $region52: #{transformer_layer.4} parent=35 // pred_fallthru
          _
      $region36: #{transformer_layer.4} parent=5 // pred_fallthru
        _
      %p1547 = scmp.le.s32.totalorder 2, %s13
      // Predicated region
      $region53: #{transformer_layer.4} parent=5 // pred_check
        %p1548 = pneg %p1547
      $region54: #{transformer_layer.4} parent=5 // pred_check_branch
        %1550 = sbr.rel (%p1548) target = $region56
      $region55: #{transformer_layer.4} parent=5 // pred_region
        %s1551 = ssub.s32 %s13, 2
        // Predicated region
        $region57: #{transformer_layer.4} parent=55 // pred_check
          %p1552 = pneg %p177
        $region58: #{transformer_layer.4} parent=55 // pred_check_branch
          %1554 = sbr.rel (%p1552) target = $region60
        $region59: #{transformer_layer.4} parent=55 // pred_region
          %p1555 = scmp.lt.s32.totalorder %s26, 1
          %s1556 = scalar_select %p1555, %s26, 1
          %p1557 = scmp.lt.s32.totalorder %s27, 0
          %s1558 = scalar_select %p1557, %s27, 0
          %s1559 = sadd.s32 %s1558, %s1556
          %s1560 = smul.addr %s1559, 4
          %s1561 = scalar_lea.vmem %s4, %s1560
        $region60: #{transformer_layer.4} parent=55 // pred_fallthru
          _
      $region56: #{transformer_layer.4} parent=5 // pred_fallthru
        _
    $region6: #{transformer_layer.4} parent=1 // loop_footer
      %s17 = sadd.s32 1, %s13
    $region7: #{transformer_layer.4} parent=1 // loop_footer_branch
      %12 = sbr.rel target = $region3
    $region8: #{transformer_layer.4} parent=1 // loop_exit
      _
    %1562 = vsyncpa [#allocation6], 1
    %s1563 = scalar_lea.sflag [#allocation6], 1
    %1564 = vsyncpa %s1563, 1

</llo_original>
